<compile_context>
chip_gen: v5e
topology: v5e:2x2
jax: 0.10.0
libtpu: 0.0.40
codegen_flags: <defaults>
</compile_context>

<pallas_src>
import functools
import math

import jax
import jax.numpy as jnp
import numpy as np
from jax import lax
from jax.experimental import pallas as pl
from jax.experimental.pallas import tpu as pltpu

INTER = 24          # SpatialEncoder.inter_size
BN_EPS = 1e-5


def spatial_encoder_kernel(x_ref, w5_ref, b5_ref, w6c_ref, b6c_ref,
                           w7_ref, b7_ref, s7_ref, t7_ref,
                           wfc_ref, bfc_ref, mask_ref,
                           out_ref, a_ref, resid_ref, *, H, W, tb):
    """One grid step = one tile of TB images flattened to N = TB*H*W lanes.

    x_ref    : (1, C, N)      input tile, channels on sublanes
    w5_ref   : (K, C)         conv5 (bn5 folded), b5_ref (K, 1)
    w6c_ref  : (2K, 9K)       conv6 (bn6 folded) stacked on top of the conv8 1x1
                              residual (w8 sits in the centre-tap column block);
                              b6c_ref (2K, 1)
    w7_ref   : (K, 9K)        conv7 taps flattened, b7_ref (K, 1)
    s7/t7    : (K, 1)         bn7 eval-mode affine (applied after the residual add)
    wfc_ref  : (F, K)         fc linear, bfc_ref (F, 1)
    mask_ref : (9, N)         precomputed per-tap boundary masks (grid invariant)
    out_ref  : (1, F, TB)
    a_ref    : (9K, N) VMEM   staging slab for the 9 shifted taps
    resid_ref: (K, N)  VMEM   parked conv8 residual, reread after conv7
    """
    N = x_ref.shape[2]
    K = resid_ref.shape[0]                                           # INTER
    HW = H * W

    x = x_ref[0]                                                     # (C, N)

    # conv5 (per-pixel channel mixing) + folded bn5 + relu — one batched matmul.
    h = jnp.dot(w5_ref[...], x, preferred_element_type=jnp.float32) + b5_ref[...]
    h = jnp.maximum(h, 0.0)                                          # (K, N)

    def stage_taps(act):
        # Store the activation once (centre tap), then derive the other 8 taps by
        # rolling the VMEM-resident centre slab (XLU slot) and applying the
        # precomputed boundary mask.  Circular wrap-around is always masked.
        a_ref[4 * K:5 * K, :] = act
        for dh in (-1, 0, 1):
            for dw in (-1, 0, 1):
                if dh == 0 and dw == 0:
                    continue
                k = (dh + 1) * 3 + (dw + 1)
                d = dh * W + dw
                piece = pltpu.roll(a_ref[4 * K:5 * K, :], shift=(-d) % N, axis=1)
                a_ref[k * K:(k + 1) * K, :] = piece * mask_ref[k:k + 1, :]

    # conv6 (+ folded bn6) fused with the conv8 residual: one (2K, 9K) @ (9K, N)
    # matmul; top K rows are conv6, bottom K rows are the residual branch.
    stage_taps(h)
    z = jnp.dot(w6c_ref[...], a_ref[...], preferred_element_type=jnp.float32) + b6c_ref[...]
    resid_ref[...] = z[K:, :]                 # park residual; reread after conv7
    h = jnp.maximum(z[:K, :], 0.0)            # (K, N)

    # conv7: fused 9-tap matmul.
    stage_taps(h)
    h = jnp.dot(w7_ref[...], a_ref[...], preferred_element_type=jnp.float32) + b7_ref[...]

    # residual add, bn7 eval affine, relu.
    y = jnp.maximum((resid_ref[...] + h) * s7_ref[...] + t7_ref[...], 0.0)   # (K, N)

    # AdaptiveAvgPool2d((1,1)): per-image lane reduction (no O(TB^2) pool matmul).
    if tb == 1:
        pooled = jnp.sum(y, axis=-1, keepdims=True) * (1.0 / HW)             # (K, 1)
    else:
        pooled = jnp.sum(y.reshape(K, tb, HW), axis=-1) * (1.0 / HW)         # (K, TB)

    # fc; Dropout(p=0.5) is identity in eval mode.
    # TODO(synk): training-mode dropout (RNG mask) not implemented.
    out = jnp.dot(wfc_ref[...], pooled, preferred_element_type=jnp.float32) + bfc_ref[...]
    out_ref[...] = out[None, :, :].astype(out_ref.dtype)                     # (1, F, TB)


def _pick_batch_tile(B, HW, C, batch_tile, vmem_budget):
    """Largest divisor of B <= batch_tile fitting the VMEM budget, grid kept >= 2."""
    per_img = ((9 * INTER + INTER) * HW * 4        # a_ref + resid scratch (f32)
               + 2 * C * HW * 4                    # double-buffered x tile
               + 2 * 9 * HW * 4)                   # mask slab
    fixed = 2 * 1024 * 1024                        # weights / biases / output / slack
    tb = 1
    for cand in range(min(batch_tile, B), 0, -1):
        if B % cand:
            continue
        if fixed + cand * per_img > vmem_budget:
            continue
        tb = cand
        break
    # Keep the grid length >= 2 when possible so dimension_semantics=("parallel",)
    # can shard grid steps across both TensorCores on v7x.
    if B // tb == 1 and B > 1:
        for cand in range(tb - 1, 0, -1):
            if B % cand == 0 and B // cand >= 2:
                tb = cand
                break
    return tb


def spatial_encoder_forward(x_nchw, p, *, batch_tile=128):
    B, C, H, W = x_nchw.shape
    F_ = p["wfc"].shape[1]
    HW = H * W

    # Generation-aware VMEM budget: ~96 MiB on v5e/v6e (128 MiB physical),
    # ~48 MiB on v7x (64 MiB per TensorCore).  Passed as vmem_limit_bytes so the
    # larger batch tiles are not rejected by the default scoped limit.
    try:
        vmem_cap = pltpu.get_tpu_info().vmem_capacity_bytes
    except Exception:
        vmem_cap = 64 * 1024 * 1024
    vmem_budget = min(int(vmem_cap) * 3 // 4, 100 * 1024 * 1024)

    tb = _pick_batch_tile(B, HW, C, batch_tile, vmem_budget)
    T = B // tb
    N = tb * HW

    # (B, C, H, W) -> tiles of TB images, batch+spatial flattened onto lanes.
    # NOTE: this host-side relayout is one extra HBM copy of the input; at large B
    # feed data already in (C, B*HW)-friendly layout upstream instead.
    x_tiles = (x_nchw.astype(jnp.float32)
               .reshape(T, tb, C, HW).transpose(0, 2, 1, 3).reshape(T, C, N))

    # Fold eval-mode BatchNorm affines into the preceding convs (exact algebra).
    s5 = p["g5"] / jnp.sqrt(p["v5"] + BN_EPS); t5 = p["be5"] - p["m5"] * s5
    s6 = p["g6"] / jnp.sqrt(p["v6"] + BN_EPS); t6 = p["be6"] - p["m6"] * s6
    s7 = p["g7"] / jnp.sqrt(p["v7"] + BN_EPS); t7 = p["be7"] - p["m7"] * s7

    w5t = (p["w5"] * s5[None, :]).T                                  # (K, C)
    b5c = (p["b5"] * s5 + t5)[:, None]                               # (K, 1)
    # conv6 taps (9, in, out) -> (out, 9*in); conv8 fused below it as K extra
    # output rows placed in the centre-tap (k=4) column block.
    w6f = jnp.transpose(p["w6"] * s6[None, None, :], (2, 0, 1)).reshape(INTER, 9 * INTER)
    w8blk = jnp.zeros((INTER, 9 * INTER), jnp.float32)
    w8blk = w8blk.at[:, 4 * INTER:5 * INTER].set(p["w8"].T)
    w6c = jnp.concatenate([w6f, w8blk], axis=0)                      # (2K, 9K)
    b6c = jnp.concatenate([p["b6"] * s6 + t6, p["b8"]], axis=0)[:, None]
    w7f = jnp.transpose(p["w7"], (2, 0, 1)).reshape(INTER, 9 * INTER)
    b7c = p["b7"][:, None]
    wfct = p["wfc"].T                                                # (F, K)
    bfcc = p["bfc"][:, None]

    # Precomputed grid-invariant boundary masks, one row per 3x3 tap: zero padding
    # at image edges, and no bleed across image/tile boundaries under the roll.
    pos = np.arange(N)
    col = pos % W
    row = (pos // W) % H
    masks_np = np.ones((9, N), np.float32)
    for dh in (-1, 0, 1):
        for dw in (-1, 0, 1):
            k = (dh + 1) * 3 + (dw + 1)
            m = np.ones(N, np.float32)
            if dh == -1:
                m *= (row > 0)
            if dh == 1:
                m *= (row < H - 1)
            if dw == -1:
                m *= (col > 0)
            if dw == 1:
                m *= (col < W - 1)
            masks_np[k] = m
    masks = jnp.asarray(masks_np)

    args = (x_tiles, w5t, b5c, w6c, b6c, w7f, b7c,
            s7[:, None], t7[:, None], wfct, bfcc, masks)

    def full_spec(a):
        return pl.BlockSpec(a.shape, lambda t, nd=a.ndim: (0,) * nd)

    in_specs = ([pl.BlockSpec((1, C, N), lambda t: (t, 0, 0))]
                + [full_spec(a) for a in args[1:]])
    out_spec = pl.BlockSpec((1, F_, tb), lambda t: (t, 0, 0))

    kernel = functools.partial(spatial_encoder_kernel, H=H, W=W, tb=tb)

    out = pl.pallas_call(
        kernel,
        out_shape=jax.ShapeDtypeStruct((T, F_, tb), jnp.float32),
        grid_spec=pltpu.PrefetchScalarGridSpec(
            num_scalar_prefetch=0,
            grid=(T,),
            in_specs=in_specs,
            out_specs=out_spec,
            scratch_shapes=[pltpu.VMEM((9 * INTER, N), jnp.float32),
                            pltpu.VMEM((INTER, N), jnp.float32)],
        ),
        compiler_params=pltpu.CompilerParams(
            dimension_semantics=("parallel",),
            vmem_limit_bytes=vmem_budget),
    )(*args)
    # (T, F, TB) -> (B, F)
    return jnp.transpose(out, (0, 2, 1)).reshape(B, F_)


def init_params(key, input_channels, feature_dim):
    ks = jax.random.split(key, 24)
    n = lambda k, shape, scale: (scale * jax.random.normal(k, shape)).astype(jnp.float32)
    p = {}
    p["w5"] = n(ks[0], (input_channels, INTER), 1.0 / math.sqrt(input_channels))
    p["b5"] = n(ks[1], (INTER,), 0.1)
    p["w8"] = n(ks[2], (INTER, INTER), 1.0 / math.sqrt(INTER))
    p["b8"] = n(ks[3], (INTER,), 0.1)
    p["w6"] = n(ks[4], (9, INTER, INTER), 1.0 / math.sqrt(9 * INTER))
    p["b6"] = n(ks[5], (INTER,), 0.1)
    p["w7"] = n(ks[6], (9, INTER, INTER), 1.0 / math.sqrt(9 * INTER))
    p["b7"] = n(ks[7], (INTER,), 0.1)
    p["wfc"] = n(ks[8], (INTER, feature_dim), 1.0 / math.sqrt(INTER))
    p["bfc"] = n(ks[9], (feature_dim,), 0.1)
    # Eval-mode BatchNorm parameters / running statistics (non-trivial values).
    for i, name in enumerate(("5", "6", "7")):
        p["g" + name] = (1.0 + 0.1 * jax.random.normal(ks[10 + i], (INTER,))).astype(jnp.float32)
        p["be" + name] = n(ks[13 + i], (INTER,), 0.1)
        p["m" + name] = n(ks[16 + i], (INTER,), 0.1)
        p["v" + name] = (0.5 + 0.5 * jnp.abs(jax.random.normal(ks[19 + i], (INTER,)))).astype(jnp.float32)
    return p


def reference_forward(x_nchw, p):
    """Plain-JAX reference mirroring the PyTorch NCHW forward (eval mode)."""
    def bn(y, g, be, m, v):
        s = g / jnp.sqrt(v + BN_EPS)
        return (y - m[None, :, None, None]) * s[None, :, None, None] + be[None, :, None, None]

    y = jnp.einsum("bchw,ck->bkhw", x_nchw, p["w5"]) + p["b5"][None, :, None, None]
    y = jax.nn.relu(bn(y, p["g5"], p["be5"], p["m5"], p["v5"]))
    resid = jnp.einsum("bchw,ck->bkhw", y, p["w8"]) + p["b8"][None, :, None, None]
    w6 = p["w6"].reshape(3, 3, INTER, INTER)   # HWIO
    y2 = lax.conv_general_dilated(y, w6, (1, 1), ((1, 1), (1, 1)),
                                  dimension_numbers=("NCHW", "HWIO", "NCHW"))
    y2 = y2 + p["b6"][None, :, None, None]
    y2 = jax.nn.relu(bn(y2, p["g6"], p["be6"], p["m6"], p["v6"]))
    w7 = p["w7"].reshape(3, 3, INTER, INTER)
    y3 = lax.conv_general_dilated(y2, w7, (1, 1), ((1, 1), (1, 1)),
                                  dimension_numbers=("NCHW", "HWIO", "NCHW"))
    y3 = y3 + p["b7"][None, :, None, None]
    y = jax.nn.relu(bn(resid + y3, p["g7"], p["be7"], p["m7"], p["v7"]))
    pooled = jnp.mean(y, axis=(2, 3))
    return pooled @ p["wfc"] + p["bfc"][None, :]


if __name__ == "__main__":
    # SpatialEncoder(input_channels=4, patch_size=16, feature_dim=32), batch=2
    B, C, H, W, F_ = 2, 4, 16, 16, 32
    key = jax.random.PRNGKey(0)
    kx, kp = jax.random.split(key)
    x = jax.random.normal(kx, (B, C, H, W), dtype=jnp.float32)
    params = init_params(kp, C, F_)

    out = spatial_encoder_forward(x, params)
    out = jax.block_until_ready(out)
    assert out.shape == (B, F_)

    ref = reference_forward(x, params)
    np.testing.assert_allclose(np.asarray(out), np.asarray(ref), rtol=5e-2, atol=5e-2)
    print("KERNEL_OK")
</pallas_src>

<mosaic_0001>
module attributes {stable_mosaic.version = 11 : i64} {
  func.func @spatial_encoder_kernel(%arg0: i32, %arg1: memref<1x4x256xf32, #tpu.memory_space<vmem>>, %arg2: memref<24x4xf32, #tpu.memory_space<vmem>>, %arg3: memref<24x1xf32, #tpu.memory_space<vmem>>, %arg4: memref<48x216xf32, #tpu.memory_space<vmem>>, %arg5: memref<48x1xf32, #tpu.memory_space<vmem>>, %arg6: memref<24x216xf32, #tpu.memory_space<vmem>>, %arg7: memref<24x1xf32, #tpu.memory_space<vmem>>, %arg8: memref<24x1xf32, #tpu.memory_space<vmem>>, %arg9: memref<24x1xf32, #tpu.memory_space<vmem>>, %arg10: memref<32x24xf32, #tpu.memory_space<vmem>>, %arg11: memref<32x1xf32, #tpu.memory_space<vmem>>, %arg12: memref<9x256xf32, #tpu.memory_space<vmem>>, %arg13: memref<1x32x1xf32, #tpu.memory_space<vmem>>, %arg14: memref<216x256xf32, #tpu.memory_space<vmem>>, %arg15: memref<24x256xf32, #tpu.memory_space<vmem>>) attributes {dimension_semantics = [#tpu.dimension_semantics<parallel>], iteration_bounds = array<i64: 2>, scalar_prefetch = 0 : i64, scratch_operands = 2 : i64, tpu.core_type = #tpu.core_type<tc>, window_params = [{transform_indices = @transform_0, window_bounds = array<i64: 1, 4, 256>}, {pipeline_mode = #tpu.pipeline_mode<synchronous>, transform_indices = @transform_1, window_bounds = array<i64: 24, 4>}, {pipeline_mode = #tpu.pipeline_mode<synchronous>, transform_indices = @transform_2, window_bounds = array<i64: 24, 1>}, {pipeline_mode = #tpu.pipeline_mode<synchronous>, transform_indices = @transform_3, window_bounds = array<i64: 48, 216>}, {pipeline_mode = #tpu.pipeline_mode<synchronous>, transform_indices = @transform_4, window_bounds = array<i64: 48, 1>}, {pipeline_mode = #tpu.pipeline_mode<synchronous>, transform_indices = @transform_5, window_bounds = array<i64: 24, 216>}, {pipeline_mode = #tpu.pipeline_mode<synchronous>, transform_indices = @transform_6, window_bounds = array<i64: 24, 1>}, {pipeline_mode = #tpu.pipeline_mode<synchronous>, transform_indices = @transform_7, window_bounds = array<i64: 24, 1>}, {pipeline_mode = #tpu.pipeline_mode<synchronous>, transform_indices = @transform_8, window_bounds = array<i64: 24, 1>}, {pipeline_mode = #tpu.pipeline_mode<synchronous>, transform_indices = @transform_9, window_bounds = array<i64: 32, 24>}, {pipeline_mode = #tpu.pipeline_mode<synchronous>, transform_indices = @transform_10, window_bounds = array<i64: 32, 1>}, {pipeline_mode = #tpu.pipeline_mode<synchronous>, transform_indices = @transform_11, window_bounds = array<i64: 9, 256>}, {transform_indices = @transform_12, window_bounds = array<i64: 1, 32, 1>}]} {
    %c0 = arith.constant 0 : index
    %c0_0 = arith.constant 0 : index
    %c0_1 = arith.constant 0 : index
    %0 = vector.load %arg1[%c0, %c0_0, %c0_1] : memref<1x4x256xf32, #tpu.memory_space<vmem>>, vector<1x4x256xf32>
    %1 = vector.shape_cast %0 : vector<1x4x256xf32> to vector<4x256xf32>
    %c0_2 = arith.constant 0 : index
    %c0_3 = arith.constant 0 : index
    %2 = vector.load %arg2[%c0_2, %c0_3] : memref<24x4xf32, #tpu.memory_space<vmem>>, vector<24x4xf32>
    %cst = arith.constant dense<0.000000e+00> : vector<24x256xf32>
    %3 = tpu.matmul %2, %1, %cst {dimension_numbers = #tpu.dot_dimension_numbers<[1], [0], [0], [1], [0, 0, 1, 1], [], []>} : vector<24x4xf32>, vector<4x256xf32>, vector<24x256xf32> -> vector<24x256xf32>
    %c0_4 = arith.constant 0 : index
    %c0_5 = arith.constant 0 : index
    %4 = vector.load %arg3[%c0_4, %c0_5] : memref<24x1xf32, #tpu.memory_space<vmem>>, vector<24x1xf32>
    %5 = vector.broadcast %4 : vector<24x1xf32> to vector<24x256xf32>
    %6 = arith.addf %3, %5 : vector<24x256xf32>
    %cst_6 = arith.constant 0.000000e+00 : f32
    %7 = vector.broadcast %cst_6 : f32 to vector<24x256xf32>
    %8 = arith.maximumf %6, %7 : vector<24x256xf32>
    %c96 = arith.constant 96 : index
    %c0_7 = arith.constant 0 : index
    %9 = vector.load %arg14[%c96, %c0_7] : memref<216x256xf32, #tpu.memory_space<vmem>>, vector<24x256xf32>
    tpu.vector_store %arg14[%c96, %c0_7], %8 {strides = array<i32>} : memref<216x256xf32, #tpu.memory_space<vmem>>, vector<24x256xf32>,
    %c96_8 = arith.constant 96 : index
    %c0_9 = arith.constant 0 : index
    %10 = vector.load %arg14[%c96_8, %c0_9] : memref<216x256xf32, #tpu.memory_space<vmem>>, vector<24x256xf32>
    %c17_i32 = arith.constant 17 : i32
    %11 = tpu.dynamic_rotate %10 by %c17_i32 dim 1 : vector<24x256xf32>, i32 -> vector<24x256xf32>
    %c0_10 = arith.constant 0 : index
    %c0_11 = arith.constant 0 : index
    %12 = vector.load %arg12[%c0_10, %c0_11] : memref<9x256xf32, #tpu.memory_space<vmem>>, vector<1x256xf32>
    %13 = vector.broadcast %12 : vector<1x256xf32> to vector<24x256xf32>
    %14 = arith.mulf %11, %13 : vector<24x256xf32>
    %c0_12 = arith.constant 0 : index
    %c0_13 = arith.constant 0 : index
    %15 = vector.load %arg14[%c0_12, %c0_13] : memref<216x256xf32, #tpu.memory_space<vmem>>, vector<24x256xf32>
    tpu.vector_store %arg14[%c0_12, %c0_13], %14 {strides = array<i32>} : memref<216x256xf32, #tpu.memory_space<vmem>>, vector<24x256xf32>,
    %c96_14 = arith.constant 96 : index
    %c0_15 = arith.constant 0 : index
    %16 = vector.load %arg14[%c96_14, %c0_15] : memref<216x256xf32, #tpu.memory_space<vmem>>, vector<24x256xf32>
    %c16_i32 = arith.constant 16 : i32
    %17 = tpu.dynamic_rotate %16 by %c16_i32 dim 1 : vector<24x256xf32>, i32 -> vector<24x256xf32>
    %c1 = arith.constant 1 : index
    %c0_16 = arith.constant 0 : index
    %18 = vector.load %arg12[%c1, %c0_16] : memref<9x256xf32, #tpu.memory_space<vmem>>, vector<1x256xf32>
    %19 = vector.broadcast %18 : vector<1x256xf32> to vector<24x256xf32>
    %20 = arith.mulf %17, %19 : vector<24x256xf32>
    %c24 = arith.constant 24 : index
    %c0_17 = arith.constant 0 : index
    %21 = vector.load %arg14[%c24, %c0_17] : memref<216x256xf32, #tpu.memory_space<vmem>>, vector<24x256xf32>
    tpu.vector_store %arg14[%c24, %c0_17], %20 {strides = array<i32>} : memref<216x256xf32, #tpu.memory_space<vmem>>, vector<24x256xf32>,
    %c96_18 = arith.constant 96 : index
    %c0_19 = arith.constant 0 : index
    %22 = vector.load %arg14[%c96_18, %c0_19] : memref<216x256xf32, #tpu.memory_space<vmem>>, vector<24x256xf32>
    %c15_i32 = arith.constant 15 : i32
    %23 = tpu.dynamic_rotate %22 by %c15_i32 dim 1 : vector<24x256xf32>, i32 -> vector<24x256xf32>
    %c2 = arith.constant 2 : index
    %c0_20 = arith.constant 0 : index
    %24 = vector.load %arg12[%c2, %c0_20] : memref<9x256xf32, #tpu.memory_space<vmem>>, vector<1x256xf32>
    %25 = vector.broadcast %24 : vector<1x256xf32> to vector<24x256xf32>
    %26 = arith.mulf %23, %25 : vector<24x256xf32>
    %c48 = arith.constant 48 : index
    %c0_21 = arith.constant 0 : index
    %27 = vector.load %arg14[%c48, %c0_21] : memref<216x256xf32, #tpu.memory_space<vmem>>, vector<24x256xf32>
    tpu.vector_store %arg14[%c48, %c0_21], %26 {strides = array<i32>} : memref<216x256xf32, #tpu.memory_space<vmem>>, vector<24x256xf32>,
    %c96_22 = arith.constant 96 : index
    %c0_23 = arith.constant 0 : index
    %28 = vector.load %arg14[%c96_22, %c0_23] : memref<216x256xf32, #tpu.memory_space<vmem>>, vector<24x256xf32>
    %c1_i32 = arith.constant 1 : i32
    %29 = tpu.dynamic_rotate %28 by %c1_i32 dim 1 : vector<24x256xf32>, i32 -> vector<24x256xf32>
    %c3 = arith.constant 3 : index
    %c0_24 = arith.constant 0 : index
    %30 = vector.load %arg12[%c3, %c0_24] : memref<9x256xf32, #tpu.memory_space<vmem>>, vector<1x256xf32>
    %31 = vector.broadcast %30 : vector<1x256xf32> to vector<24x256xf32>
    %32 = arith.mulf %29, %31 : vector<24x256xf32>
    %c72 = arith.constant 72 : index
    %c0_25 = arith.constant 0 : index
    %33 = vector.load %arg14[%c72, %c0_25] : memref<216x256xf32, #tpu.memory_space<vmem>>, vector<24x256xf32>
    tpu.vector_store %arg14[%c72, %c0_25], %32 {strides = array<i32>} : memref<216x256xf32, #tpu.memory_space<vmem>>, vector<24x256xf32>,
    %c96_26 = arith.constant 96 : index
    %c0_27 = arith.constant 0 : index
    %34 = vector.load %arg14[%c96_26, %c0_27] : memref<216x256xf32, #tpu.memory_space<vmem>>, vector<24x256xf32>
    %c255_i32 = arith.constant 255 : i32
    %35 = tpu.dynamic_rotate %34 by %c255_i32 dim 1 : vector<24x256xf32>, i32 -> vector<24x256xf32>
    %c5 = arith.constant 5 : index
    %c0_28 = arith.constant 0 : index
    %36 = vector.load %arg12[%c5, %c0_28] : memref<9x256xf32, #tpu.memory_space<vmem>>, vector<1x256xf32>
    %37 = vector.broadcast %36 : vector<1x256xf32> to vector<24x256xf32>
    %38 = arith.mulf %35, %37 : vector<24x256xf32>
    %c120 = arith.constant 120 : index
    %c0_29 = arith.constant 0 : index
    %39 = vector.load %arg14[%c120, %c0_29] : memref<216x256xf32, #tpu.memory_space<vmem>>, vector<24x256xf32>
    tpu.vector_store %arg14[%c120, %c0_29], %38 {strides = array<i32>} : memref<216x256xf32, #tpu.memory_space<vmem>>, vector<24x256xf32>,
    %c96_30 = arith.constant 96 : index
    %c0_31 = arith.constant 0 : index
    %40 = vector.load %arg14[%c96_30, %c0_31] : memref<216x256xf32, #tpu.memory_space<vmem>>, vector<24x256xf32>
    %c241_i32 = arith.constant 241 : i32
    %41 = tpu.dynamic_rotate %40 by %c241_i32 dim 1 : vector<24x256xf32>, i32 -> vector<24x256xf32>
    %c6 = arith.constant 6 : index
    %c0_32 = arith.constant 0 : index
    %42 = vector.load %arg12[%c6, %c0_32] : memref<9x256xf32, #tpu.memory_space<vmem>>, vector<1x256xf32>
    %43 = vector.broadcast %42 : vector<1x256xf32> to vector<24x256xf32>
    %44 = arith.mulf %41, %43 : vector<24x256xf32>
    %c144 = arith.constant 144 : index
    %c0_33 = arith.constant 0 : index
    %45 = vector.load %arg14[%c144, %c0_33] : memref<216x256xf32, #tpu.memory_space<vmem>>, vector<24x256xf32>
    tpu.vector_store %arg14[%c144, %c0_33], %44 {strides = array<i32>} : memref<216x256xf32, #tpu.memory_space<vmem>>, vector<24x256xf32>,
    %c96_34 = arith.constant 96 : index
    %c0_35 = arith.constant 0 : index
    %46 = vector.load %arg14[%c96_34, %c0_35] : memref<216x256xf32, #tpu.memory_space<vmem>>, vector<24x256xf32>
    %c240_i32 = arith.constant 240 : i32
    %47 = tpu.dynamic_rotate %46 by %c240_i32 dim 1 : vector<24x256xf32>, i32 -> vector<24x256xf32>
    %c7 = arith.constant 7 : index
    %c0_36 = arith.constant 0 : index
    %48 = vector.load %arg12[%c7, %c0_36] : memref<9x256xf32, #tpu.memory_space<vmem>>, vector<1x256xf32>
    %49 = vector.broadcast %48 : vector<1x256xf32> to vector<24x256xf32>
    %50 = arith.mulf %47, %49 : vector<24x256xf32>
    %c168 = arith.constant 168 : index
    %c0_37 = arith.constant 0 : index
    %51 = vector.load %arg14[%c168, %c0_37] : memref<216x256xf32, #tpu.memory_space<vmem>>, vector<24x256xf32>
    tpu.vector_store %arg14[%c168, %c0_37], %50 {strides = array<i32>} : memref<216x256xf32, #tpu.memory_space<vmem>>, vector<24x256xf32>,
    %c96_38 = arith.constant 96 : index
    %c0_39 = arith.constant 0 : index
    %52 = vector.load %arg14[%c96_38, %c0_39] : memref<216x256xf32, #tpu.memory_space<vmem>>, vector<24x256xf32>
    %c239_i32 = arith.constant 239 : i32
    %53 = tpu.dynamic_rotate %52 by %c239_i32 dim 1 : vector<24x256xf32>, i32 -> vector<24x256xf32>
    %c8 = arith.constant 8 : index
    %c0_40 = arith.constant 0 : index
    %54 = vector.load %arg12[%c8, %c0_40] : memref<9x256xf32, #tpu.memory_space<vmem>>, vector<1x256xf32>
    %55 = vector.broadcast %54 : vector<1x256xf32> to vector<24x256xf32>
    %56 = arith.mulf %53, %55 : vector<24x256xf32>
    %c192 = arith.constant 192 : index
    %c0_41 = arith.constant 0 : index
    %57 = vector.load %arg14[%c192, %c0_41] : memref<216x256xf32, #tpu.memory_space<vmem>>, vector<24x256xf32>
    tpu.vector_store %arg14[%c192, %c0_41], %56 {strides = array<i32>} : memref<216x256xf32, #tpu.memory_space<vmem>>, vector<24x256xf32>,
    %c0_42 = arith.constant 0 : index
    %c0_43 = arith.constant 0 : index
    %58 = vector.load %arg4[%c0_42, %c0_43] : memref<48x216xf32, #tpu.memory_space<vmem>>, vector<48x216xf32>
    %c0_44 = arith.constant 0 : index
    %c0_45 = arith.constant 0 : index
    %59 = vector.load %arg14[%c0_44, %c0_45] : memref<216x256xf32, #tpu.memory_space<vmem>>, vector<216x256xf32>
    %cst_46 = arith.constant dense<0.000000e+00> : vector<48x256xf32>
    %60 = tpu.matmul %58, %59, %cst_46 {dimension_numbers = #tpu.dot_dimension_numbers<[1], [0], [0], [1], [0, 0, 1, 1], [], []>} : vector<48x216xf32>, vector<216x256xf32>, vector<48x256xf32> -> vector<48x256xf32>
    %c0_47 = arith.constant 0 : index
    %c0_48 = arith.constant 0 : index
    %61 = vector.load %arg5[%c0_47, %c0_48] : memref<48x1xf32, #tpu.memory_space<vmem>>, vector<48x1xf32>
    %62 = vector.broadcast %61 : vector<48x1xf32> to vector<48x256xf32>
    %63 = arith.addf %60, %62 : vector<48x256xf32>
    %64 = vector.extract_strided_slice %63 {offsets = [24, 0], sizes = [24, 256], strides = [1, 1]} : vector<48x256xf32> to vector<24x256xf32>
    %c0_49 = arith.constant 0 : index
    %c0_50 = arith.constant 0 : index
    %65 = vector.load %arg15[%c0_49, %c0_50] : memref<24x256xf32, #tpu.memory_space<vmem>>, vector<24x256xf32>
    tpu.vector_store %arg15[%c0_49, %c0_50], %64 {strides = array<i32>} : memref<24x256xf32, #tpu.memory_space<vmem>>, vector<24x256xf32>,
    %66 = vector.extract_strided_slice %63 {offsets = [0, 0], sizes = [24, 256], strides = [1, 1]} : vector<48x256xf32> to vector<24x256xf32>
    %cst_51 = arith.constant 0.000000e+00 : f32
    %67 = vector.broadcast %cst_51 : f32 to vector<24x256xf32>
    %68 = arith.maximumf %66, %67 : vector<24x256xf32>
    %c96_52 = arith.constant 96 : index
    %c0_53 = arith.constant 0 : index
    %69 = vector.load %arg14[%c96_52, %c0_53] : memref<216x256xf32, #tpu.memory_space<vmem>>, vector<24x256xf32>
    tpu.vector_store %arg14[%c96_52, %c0_53], %68 {strides = array<i32>} : memref<216x256xf32, #tpu.memory_space<vmem>>, vector<24x256xf32>,
    %c96_54 = arith.constant 96 : index
    %c0_55 = arith.constant 0 : index
    %70 = vector.load %arg14[%c96_54, %c0_55] : memref<216x256xf32, #tpu.memory_space<vmem>>, vector<24x256xf32>
    %c17_i32_56 = arith.constant 17 : i32
    %71 = tpu.dynamic_rotate %70 by %c17_i32_56 dim 1 : vector<24x256xf32>, i32 -> vector<24x256xf32>
    %c0_57 = arith.constant 0 : index
    %c0_58 = arith.constant 0 : index
    %72 = vector.load %arg12[%c0_57, %c0_58] : memref<9x256xf32, #tpu.memory_space<vmem>>, vector<1x256xf32>
    %73 = vector.broadcast %72 : vector<1x256xf32> to vector<24x256xf32>
    %74 = arith.mulf %71, %73 : vector<24x256xf32>
    %c0_59 = arith.constant 0 : index
    %c0_60 = arith.constant 0 : index
    %75 = vector.load %arg14[%c0_59, %c0_60] : memref<216x256xf32, #tpu.memory_space<vmem>>, vector<24x256xf32>
    tpu.vector_store %arg14[%c0_59, %c0_60], %74 {strides = array<i32>} : memref<216x256xf32, #tpu.memory_space<vmem>>, vector<24x256xf32>,
    %c96_61 = arith.constant 96 : index
    %c0_62 = arith.constant 0 : index
    %76 = vector.load %arg14[%c96_61, %c0_62] : memref<216x256xf32, #tpu.memory_space<vmem>>, vector<24x256xf32>
    %c16_i32_63 = arith.constant 16 : i32
    %77 = tpu.dynamic_rotate %76 by %c16_i32_63 dim 1 : vector<24x256xf32>, i32 -> vector<24x256xf32>
    %c1_64 = arith.constant 1 : index
    %c0_65 = arith.constant 0 : index
    %78 = vector.load %arg12[%c1_64, %c0_65] : memref<9x256xf32, #tpu.memory_space<vmem>>, vector<1x256xf32>
    %79 = vector.broadcast %78 : vector<1x256xf32> to vector<24x256xf32>
    %80 = arith.mulf %77, %79 : vector<24x256xf32>
    %c24_66 = arith.constant 24 : index
    %c0_67 = arith.constant 0 : index
    %81 = vector.load %arg14[%c24_66, %c0_67] : memref<216x256xf32, #tpu.memory_space<vmem>>, vector<24x256xf32>
    tpu.vector_store %arg14[%c24_66, %c0_67], %80 {strides = array<i32>} : memref<216x256xf32, #tpu.memory_space<vmem>>, vector<24x256xf32>,
    %c96_68 = arith.constant 96 : index
    %c0_69 = arith.constant 0 : index
    %82 = vector.load %arg14[%c96_68, %c0_69] : memref<216x256xf32, #tpu.memory_space<vmem>>, vector<24x256xf32>
    %c15_i32_70 = arith.constant 15 : i32
    %83 = tpu.dynamic_rotate %82 by %c15_i32_70 dim 1 : vector<24x256xf32>, i32 -> vector<24x256xf32>
    %c2_71 = arith.constant 2 : index
    %c0_72 = arith.constant 0 : index
    %84 = vector.load %arg12[%c2_71, %c0_72] : memref<9x256xf32, #tpu.memory_space<vmem>>, vector<1x256xf32>
    %85 = vector.broadcast %84 : vector<1x256xf32> to vector<24x256xf32>
    %86 = arith.mulf %83, %85 : vector<24x256xf32>
    %c48_73 = arith.constant 48 : index
    %c0_74 = arith.constant 0 : index
    %87 = vector.load %arg14[%c48_73, %c0_74] : memref<216x256xf32, #tpu.memory_space<vmem>>, vector<24x256xf32>
    tpu.vector_store %arg14[%c48_73, %c0_74], %86 {strides = array<i32>} : memref<216x256xf32, #tpu.memory_space<vmem>>, vector<24x256xf32>,
    %c96_75 = arith.constant 96 : index
    %c0_76 = arith.constant 0 : index
    %88 = vector.load %arg14[%c96_75, %c0_76] : memref<216x256xf32, #tpu.memory_space<vmem>>, vector<24x256xf32>
    %c1_i32_77 = arith.constant 1 : i32
    %89 = tpu.dynamic_rotate %88 by %c1_i32_77 dim 1 : vector<24x256xf32>, i32 -> vector<24x256xf32>
    %c3_78 = arith.constant 3 : index
    %c0_79 = arith.constant 0 : index
    %90 = vector.load %arg12[%c3_78, %c0_79] : memref<9x256xf32, #tpu.memory_space<vmem>>, vector<1x256xf32>
    %91 = vector.broadcast %90 : vector<1x256xf32> to vector<24x256xf32>
    %92 = arith.mulf %89, %91 : vector<24x256xf32>
    %c72_80 = arith.constant 72 : index
    %c0_81 = arith.constant 0 : index
    %93 = vector.load %arg14[%c72_80, %c0_81] : memref<216x256xf32, #tpu.memory_space<vmem>>, vector<24x256xf32>
    tpu.vector_store %arg14[%c72_80, %c0_81], %92 {strides = array<i32>} : memref<216x256xf32, #tpu.memory_space<vmem>>, vector<24x256xf32>,
    %c96_82 = arith.constant 96 : index
    %c0_83 = arith.constant 0 : index
    %94 = vector.load %arg14[%c96_82, %c0_83] : memref<216x256xf32, #tpu.memory_space<vmem>>, vector<24x256xf32>
    %c255_i32_84 = arith.constant 255 : i32
    %95 = tpu.dynamic_rotate %94 by %c255_i32_84 dim 1 : vector<24x256xf32>, i32 -> vector<24x256xf32>
    %c5_85 = arith.constant 5 : index
    %c0_86 = arith.constant 0 : index
    %96 = vector.load %arg12[%c5_85, %c0_86] : memref<9x256xf32, #tpu.memory_space<vmem>>, vector<1x256xf32>
    %97 = vector.broadcast %96 : vector<1x256xf32> to vector<24x256xf32>
    %98 = arith.mulf %95, %97 : vector<24x256xf32>
    %c120_87 = arith.constant 120 : index
    %c0_88 = arith.constant 0 : index
    %99 = vector.load %arg14[%c120_87, %c0_88] : memref<216x256xf32, #tpu.memory_space<vmem>>, vector<24x256xf32>
    tpu.vector_store %arg14[%c120_87, %c0_88], %98 {strides = array<i32>} : memref<216x256xf32, #tpu.memory_space<vmem>>, vector<24x256xf32>,
    %c96_89 = arith.constant 96 : index
    %c0_90 = arith.constant 0 : index
    %100 = vector.load %arg14[%c96_89, %c0_90] : memref<216x256xf32, #tpu.memory_space<vmem>>, vector<24x256xf32>
    %c241_i32_91 = arith.constant 241 : i32
    %101 = tpu.dynamic_rotate %100 by %c241_i32_91 dim 1 : vector<24x256xf32>, i32 -> vector<24x256xf32>
    %c6_92 = arith.constant 6 : index
    %c0_93 = arith.constant 0 : index
    %102 = vector.load %arg12[%c6_92, %c0_93] : memref<9x256xf32, #tpu.memory_space<vmem>>, vector<1x256xf32>
    %103 = vector.broadcast %102 : vector<1x256xf32> to vector<24x256xf32>
    %104 = arith.mulf %101, %103 : vector<24x256xf32>
    %c144_94 = arith.constant 144 : index
    %c0_95 = arith.constant 0 : index
    %105 = vector.load %arg14[%c144_94, %c0_95] : memref<216x256xf32, #tpu.memory_space<vmem>>, vector<24x256xf32>
    tpu.vector_store %arg14[%c144_94, %c0_95], %104 {strides = array<i32>} : memref<216x256xf32, #tpu.memory_space<vmem>>, vector<24x256xf32>,
    %c96_96 = arith.constant 96 : index
    %c0_97 = arith.constant 0 : index
    %106 = vector.load %arg14[%c96_96, %c0_97] : memref<216x256xf32, #tpu.memory_space<vmem>>, vector<24x256xf32>
    %c240_i32_98 = arith.constant 240 : i32
    %107 = tpu.dynamic_rotate %106 by %c240_i32_98 dim 1 : vector<24x256xf32>, i32 -> vector<24x256xf32>
    %c7_99 = arith.constant 7 : index
    %c0_100 = arith.constant 0 : index
    %108 = vector.load %arg12[%c7_99, %c0_100] : memref<9x256xf32, #tpu.memory_space<vmem>>, vector<1x256xf32>
    %109 = vector.broadcast %108 : vector<1x256xf32> to vector<24x256xf32>
    %110 = arith.mulf %107, %109 : vector<24x256xf32>
    %c168_101 = arith.constant 168 : index
    %c0_102 = arith.constant 0 : index
    %111 = vector.load %arg14[%c168_101, %c0_102] : memref<216x256xf32, #tpu.memory_space<vmem>>, vector<24x256xf32>
    tpu.vector_store %arg14[%c168_101, %c0_102], %110 {strides = array<i32>} : memref<216x256xf32, #tpu.memory_space<vmem>>, vector<24x256xf32>,
    %c96_103 = arith.constant 96 : index
    %c0_104 = arith.constant 0 : index
    %112 = vector.load %arg14[%c96_103, %c0_104] : memref<216x256xf32, #tpu.memory_space<vmem>>, vector<24x256xf32>
    %c239_i32_105 = arith.constant 239 : i32
    %113 = tpu.dynamic_rotate %112 by %c239_i32_105 dim 1 : vector<24x256xf32>, i32 -> vector<24x256xf32>
    %c8_106 = arith.constant 8 : index
    %c0_107 = arith.constant 0 : index
    %114 = vector.load %arg12[%c8_106, %c0_107] : memref<9x256xf32, #tpu.memory_space<vmem>>, vector<1x256xf32>
    %115 = vector.broadcast %114 : vector<1x256xf32> to vector<24x256xf32>
    %116 = arith.mulf %113, %115 : vector<24x256xf32>
    %c192_108 = arith.constant 192 : index
    %c0_109 = arith.constant 0 : index
    %117 = vector.load %arg14[%c192_108, %c0_109] : memref<216x256xf32, #tpu.memory_space<vmem>>, vector<24x256xf32>
    tpu.vector_store %arg14[%c192_108, %c0_109], %116 {strides = array<i32>} : memref<216x256xf32, #tpu.memory_space<vmem>>, vector<24x256xf32>,
    %c0_110 = arith.constant 0 : index
    %c0_111 = arith.constant 0 : index
    %118 = vector.load %arg6[%c0_110, %c0_111] : memref<24x216xf32, #tpu.memory_space<vmem>>, vector<24x216xf32>
    %c0_112 = arith.constant 0 : index
    %c0_113 = arith.constant 0 : index
    %119 = vector.load %arg14[%c0_112, %c0_113] : memref<216x256xf32, #tpu.memory_space<vmem>>, vector<216x256xf32>
    %cst_114 = arith.constant dense<0.000000e+00> : vector<24x256xf32>
    %120 = tpu.matmul %118, %119, %cst_114 {dimension_numbers = #tpu.dot_dimension_numbers<[1], [0], [0], [1], [0, 0, 1, 1], [], []>} : vector<24x216xf32>, vector<216x256xf32>, vector<24x256xf32> -> vector<24x256xf32>
    %c0_115 = arith.constant 0 : index
    %c0_116 = arith.constant 0 : index
    %121 = vector.load %arg7[%c0_115, %c0_116] : memref<24x1xf32, #tpu.memory_space<vmem>>, vector<24x1xf32>
    %122 = vector.broadcast %121 : vector<24x1xf32> to vector<24x256xf32>
    %123 = arith.addf %120, %122 : vector<24x256xf32>
    %c0_117 = arith.constant 0 : index
    %c0_118 = arith.constant 0 : index
    %124 = vector.load %arg15[%c0_117, %c0_118] : memref<24x256xf32, #tpu.memory_space<vmem>>, vector<24x256xf32>
    %125 = arith.addf %124, %123 : vector<24x256xf32>
    %c0_119 = arith.constant 0 : index
    %c0_120 = arith.constant 0 : index
    %126 = vector.load %arg8[%c0_119, %c0_120] : memref<24x1xf32, #tpu.memory_space<vmem>>, vector<24x1xf32>
    %127 = vector.broadcast %126 : vector<24x1xf32> to vector<24x256xf32>
    %128 = arith.mulf %125, %127 : vector<24x256xf32>
    %c0_121 = arith.constant 0 : index
    %c0_122 = arith.constant 0 : index
    %129 = vector.load %arg9[%c0_121, %c0_122] : memref<24x1xf32, #tpu.memory_space<vmem>>, vector<24x1xf32>
    %130 = vector.broadcast %129 : vector<24x1xf32> to vector<24x256xf32>
    %131 = arith.addf %128, %130 : vector<24x256xf32>
    %cst_123 = arith.constant 0.000000e+00 : f32
    %132 = vector.broadcast %cst_123 : f32 to vector<24x256xf32>
    %133 = arith.maximumf %131, %132 : vector<24x256xf32>
    %cst_124 = arith.constant dense<0.000000e+00> : vector<24xf32>
    %134 = vector.multi_reduction <add>, %133, %cst_124 [1] : vector<24x256xf32> to vector<24xf32>
    %135 = vector.shape_cast %134 : vector<24xf32> to vector<24x1xf32>
    %cst_125 = arith.constant 3.906250e-03 : f32
    %136 = vector.broadcast %cst_125 : f32 to vector<24x1xf32>
    %137 = arith.mulf %135, %136 : vector<24x1xf32>
    %c0_126 = arith.constant 0 : index
    %c0_127 = arith.constant 0 : index
    %138 = vector.load %arg10[%c0_126, %c0_127] : memref<32x24xf32, #tpu.memory_space<vmem>>, vector<32x24xf32>
    %cst_128 = arith.constant dense<0.000000e+00> : vector<32x1xf32>
    %139 = tpu.matmul %138, %137, %cst_128 {dimension_numbers = #tpu.dot_dimension_numbers<[1], [0], [0], [1], [0, 0, 1, 1], [], []>} : vector<32x24xf32>, vector<24x1xf32>, vector<32x1xf32> -> vector<32x1xf32>
    %c0_129 = arith.constant 0 : index
    %c0_130 = arith.constant 0 : index
    %140 = vector.load %arg11[%c0_129, %c0_130] : memref<32x1xf32, #tpu.memory_space<vmem>>, vector<32x1xf32>
    %141 = arith.addf %139, %140 : vector<32x1xf32>
    %142 = vector.shape_cast %141 : vector<32x1xf32> to vector<1x32x1xf32>
    %c0_131 = arith.constant 0 : index
    %c0_132 = arith.constant 0 : index
    %c0_133 = arith.constant 0 : index
    %143 = vector.load %arg13[%c0_131, %c0_132, %c0_133] : memref<1x32x1xf32, #tpu.memory_space<vmem>>, vector<1x32x1xf32>
    tpu.vector_store %arg13[%c0_131, %c0_132, %c0_133], %142 {strides = array<i32>} : memref<1x32x1xf32, #tpu.memory_space<vmem>>, vector<1x32x1xf32>,
    return
  }
  func.func @transform_0(%arg0: i32) -> (i32, i32, i32) {
    %c0_i32 = arith.constant 0 : i32
    %c0_i32_0 = arith.constant 0 : i32
    %c0_i32_1 = arith.constant 0 : i32
    return %arg0, %c0_i32, %c0_i32_0 : i32, i32, i32
  }
  func.func @transform_1(%arg0: i32) -> (i32, i32) {
    %c0_i32 = arith.constant 0 : i32
    %c0_i32_0 = arith.constant 0 : i32
    %c0_i32_1 = arith.constant 0 : i32
    return %c0_i32, %c0_i32_0 : i32, i32
  }
  func.func @transform_2(%arg0: i32) -> (i32, i32) {
    %c0_i32 = arith.constant 0 : i32
    %c0_i32_0 = arith.constant 0 : i32
    %c0_i32_1 = arith.constant 0 : i32
    return %c0_i32, %c0_i32_0 : i32, i32
  }
  func.func @transform_3(%arg0: i32) -> (i32, i32) {
    %c0_i32 = arith.constant 0 : i32
    %c0_i32_0 = arith.constant 0 : i32
    %c0_i32_1 = arith.constant 0 : i32
    return %c0_i32, %c0_i32_0 : i32, i32
  }
  func.func @transform_4(%arg0: i32) -> (i32, i32) {
    %c0_i32 = arith.constant 0 : i32
    %c0_i32_0 = arith.constant 0 : i32
    %c0_i32_1 = arith.constant 0 : i32
    return %c0_i32, %c0_i32_0 : i32, i32
  }
  func.func @transform_5(%arg0: i32) -> (i32, i32) {
    %c0_i32 = arith.constant 0 : i32
    %c0_i32_0 = arith.constant 0 : i32
    %c0_i32_1 = arith.constant 0 : i32
    return %c0_i32, %c0_i32_0 : i32, i32
  }
  func.func @transform_6(%arg0: i32) -> (i32, i32) {
    %c0_i32 = arith.constant 0 : i32
    %c0_i32_0 = arith.constant 0 : i32
    %c0_i32_1 = arith.constant 0 : i32
    return %c0_i32, %c0_i32_0 : i32, i32
  }
  func.func @transform_7(%arg0: i32) -> (i32, i32) {
    %c0_i32 = arith.constant 0 : i32
    %c0_i32_0 = arith.constant 0 : i32
    %c0_i32_1 = arith.constant 0 : i32
    return %c0_i32, %c0_i32_0 : i32, i32
  }
  func.func @transform_8(%arg0: i32) -> (i32, i32) {
    %c0_i32 = arith.constant 0 : i32
    %c0_i32_0 = arith.constant 0 : i32
    %c0_i32_1 = arith.constant 0 : i32
    return %c0_i32, %c0_i32_0 : i32, i32
  }
  func.func @transform_9(%arg0: i32) -> (i32, i32) {
    %c0_i32 = arith.constant 0 : i32
    %c0_i32_0 = arith.constant 0 : i32
    %c0_i32_1 = arith.constant 0 : i32
    return %c0_i32, %c0_i32_0 : i32, i32
  }
  func.func @transform_10(%arg0: i32) -> (i32, i32) {
    %c0_i32 = arith.constant 0 : i32
    %c0_i32_0 = arith.constant 0 : i32
    %c0_i32_1 = arith.constant 0 : i32
    return %c0_i32, %c0_i32_0 : i32, i32
  }
  func.func @transform_11(%arg0: i32) -> (i32, i32) {
    %c0_i32 = arith.constant 0 : i32
    %c0_i32_0 = arith.constant 0 : i32
    %c0_i32_1 = arith.constant 0 : i32
    return %c0_i32, %c0_i32_0 : i32, i32
  }
  func.func @transform_12(%arg0: i32) -> (i32, i32, i32) {
    %c0_i32 = arith.constant 0 : i32
    %c0_i32_0 = arith.constant 0 : i32
    %c0_i32_1 = arith.constant 0 : i32
    return %arg0, %c0_i32, %c0_i32_0 : i32, i32, i32
  }
}

</mosaic_0001>

<llo_original>
// kernel: tpu_custom_call.1
$region0: #{tpu_custom_call.1}
  #allocation0 [shape = 'u32[]', space=smem, size = 0x4, offset = 0x4, fixed_abs, tag = 'smem constant byte address 0x4 - core index']
  #allocation1 [shape = 'u32[72,128]{1,0:T(1,128)}', space=vmem, size = 0x9000, scoped, tag = 'internal scratch']
  #allocation2 [shape = 'f32[216,256]{1,0:T(8,128)}', space=vmem, size = 0x36000, scoped, tag = 'scratch operand']
  #allocation3 [shape = 'f32[24,256]{1,0:T(8,128)}', space=vmem, size = 0x6000, scoped, tag = 'scratch operand']
  %s0 = inlined_call_operand.vmem [shape: f32[2,4,256], index: 0, kind: input, shape index: {}]
  %s1 = inlined_call_operand.vmem [shape: f32[24,4], index: 1, kind: input, shape index: {}]
  %s2 = inlined_call_operand.vmem [shape: f32[24,1], index: 2, kind: input, shape index: {}]
  %s3 = inlined_call_operand.hbm [shape: f32[48,216], index: 3, kind: input, shape index: {}]
  %s4 = inlined_call_operand.vmem [shape: f32[48,1], index: 4, kind: input, shape index: {}]
  %s5 = inlined_call_operand.vmem [shape: f32[24,216], index: 5, kind: input, shape index: {}]
  %s6 = inlined_call_operand.vmem [shape: f32[24,1], index: 6, kind: input, shape index: {}]
  %s7 = inlined_call_operand.vmem [shape: f32[24,1], index: 7, kind: input, shape index: {}]
  %s8 = inlined_call_operand.vmem [shape: f32[24,1], index: 8, kind: input, shape index: {}]
  %s9 = inlined_call_operand.vmem [shape: f32[32,24], index: 9, kind: input, shape index: {}]
  %s10 = inlined_call_operand.vmem [shape: f32[32,1], index: 10, kind: input, shape index: {}]
  %s11 = inlined_call_operand.vmem [shape: f32[9,256], index: 11, kind: input, shape index: {}]
  %s12 = inlined_call_operand.vmem [shape: f32[2,32,1], index: 12, kind: output, shape index: {}]
  %s13 = sld [smem:[#allocation0]]
  $region85: #{tpu_custom_call.1} parent=0
    _
  %s15 = ssub.s32 1, %s13
  %s16 = scalar_select 0, %s15, %s13
  $region1: #{tpu_custom_call.1} parent=0
    #allocation4 [shape = 'u8[49152]{0}', space=vmem, size = 0xc000, scoped, tag = 'input window, operand 3, single buffered']
    #allocation5 [shape = 's32[2]{0}', space=sflag, size = 0x8, scoped, tag = 'scoped memory for tpu_custom_call.1']
    %17 = vsyncpa [#allocation5], 0
    loop: start=0, step=1, limit=4
    $region2: #{tpu_custom_call.1} parent=1 // loop_pre_header
      _
    $region3: #{tpu_custom_call.1} parent=1 // loop_header
      %s19 = sphi 0, %s23
      %p20 = scmp.ge.s32.totalorder %s19, 4
      %s29 = sphi 0, %s31
      %s32 = sphi 0, %s29
      %s33 = sphi 0, %s32
      %s49 = sphi 0, %s33
      %s53 = sphi 0, %s53
      %s55 = sphi 0, %s53
      %s56 = sphi 0, %s55
      %s70 = sphi 0, %s56
      %s74 = sphi 0, %s74
      %s76 = sphi 0, %s74
      %s77 = sphi 0, %s76
      %s91 = sphi 0, %s77
      %s95 = sphi 0, %s95
      %s97 = sphi 0, %s95
      %s98 = sphi 0, %s97
      %s112 = sphi 0, %s98
      %s116 = sphi 0, %s116
      %s118 = sphi 0, %s116
      %s119 = sphi 0, %s118
      %s133 = sphi 0, %s119
      %s137 = sphi 0, %s137
      %s139 = sphi 0, %s137
      %s140 = sphi 0, %s139
      %s154 = sphi 0, %s140
      %s158 = sphi 0, %s158
      %s160 = sphi 0, %s158
      %s161 = sphi 0, %s160
      %s175 = sphi 0, %s161
      %s179 = sphi 0, %s179
      %s181 = sphi 0, %s179
      %s182 = sphi 0, %s181
      %s196 = sphi 0, %s182
      %s200 = sphi 0, %s200
      %s202 = sphi 0, %s200
      %s203 = sphi 0, %s202
      %s217 = sphi 0, %s203
      %s221 = sphi 0, %s221
      %s223 = sphi 0, %s221
      %s224 = sphi 0, %s223
      %s238 = sphi 0, %s224
      %s242 = sphi 0, %s242
      %s244 = sphi 0, %s242
      %s245 = sphi 0, %s244
      %s259 = sphi 0, %s245
      %s263 = sphi 0, %s263
      %s265 = sphi 0, %s263
      %s266 = sphi 0, %s265
      %s280 = sphi 0, %s266
      %s286 = sphi 0, %s288
      %s289 = sphi 0, %s286
      %s290 = sphi 0, %s289
      %s306 = sphi 0, %s290
    $region4: #{tpu_custom_call.1} parent=1 // loop_header_branch
      %22 = sbr.rel (%p20) target = $region8
    $region5: #{tpu_custom_call.1} parent=1 // loop_body
      %s24 = ssub.s32 %s19, 1
      %s25 = ssub.s32 %s19, 2
      %s26 = sadd.s32 %s19, 1
      %s27 = ssub.s32 %s19, %s26
      %p28 = scmp.eq.s32.totalorder %s27, 0
      %s30 = sadd.s32 %s29, 1
      %s31 = scalar_select %p28, %s29, %s30
      %p34 = pneg %p28
      %p35 = scmp.eq.s32.totalorder %s19, 1
      %p36 = por %p34, %p35
      %p37 = scmp.ne.s32.totalorder %s29, %s32
      %p38 = scmp.eq.s32.totalorder %s19, 0
      %p39 = por %p37, %p38
      %p40 = scmp.ne.s32.totalorder %s29, %s32
      %p41 = scmp.eq.s32.totalorder %s24, 1
      %p42 = por %p40, %p41
      %p43 = scmp.ne.s32.totalorder %s32, %s33
      %p44 = scmp.eq.s32.totalorder %s24, 0
      %p45 = por %p43, %p44
      %p46 = scmp.ne.s32.totalorder %s32, %s33
      %p47 = scmp.eq.s32.totalorder %s25, 1
      %p48 = por %p46, %p47
      %p50 = scmp.ne.s32.totalorder %s33, %s49
      %p51 = scmp.eq.s32.totalorder %s25, 0
      %p52 = por %p50, %p51
      %s54 = sadd.s32 %s53, 1
      %p57 = scmp.eq.s32.totalorder %s19, 1
      %p58 = scmp.ne.s32.totalorder %s53, %s55
      %p59 = scmp.eq.s32.totalorder %s19, 0
      %p60 = por %p58, %p59
      %p61 = scmp.ne.s32.totalorder %s53, %s55
      %p62 = scmp.eq.s32.totalorder %s24, 1
      %p63 = por %p61, %p62
      %p64 = scmp.ne.s32.totalorder %s55, %s56
      %p65 = scmp.eq.s32.totalorder %s24, 0
      %p66 = por %p64, %p65
      %p67 = scmp.ne.s32.totalorder %s55, %s56
      %p68 = scmp.eq.s32.totalorder %s25, 1
      %p69 = por %p67, %p68
      %p71 = scmp.ne.s32.totalorder %s56, %s70
      %p72 = scmp.eq.s32.totalorder %s25, 0
      %p73 = por %p71, %p72
      %s75 = sadd.s32 %s74, 1
      %p78 = scmp.eq.s32.totalorder %s19, 1
      %p79 = scmp.ne.s32.totalorder %s74, %s76
      %p80 = scmp.eq.s32.totalorder %s19, 0
      %p81 = por %p79, %p80
      %p82 = scmp.ne.s32.totalorder %s74, %s76
      %p83 = scmp.eq.s32.totalorder %s24, 1
      %p84 = por %p82, %p83
      %p85 = scmp.ne.s32.totalorder %s76, %s77
      %p86 = scmp.eq.s32.totalorder %s24, 0
      %p87 = por %p85, %p86
      %p88 = scmp.ne.s32.totalorder %s76, %s77
      %p89 = scmp.eq.s32.totalorder %s25, 1
      %p90 = por %p88, %p89
      %p92 = scmp.ne.s32.totalorder %s77, %s91
      %p93 = scmp.eq.s32.totalorder %s25, 0
      %p94 = por %p92, %p93
      %s96 = sadd.s32 %s95, 1
      %p99 = scmp.eq.s32.totalorder %s19, 1
      %p100 = scmp.ne.s32.totalorder %s95, %s97
      %p101 = scmp.eq.s32.totalorder %s19, 0
      %p102 = por %p100, %p101
      %p103 = scmp.ne.s32.totalorder %s95, %s97
      %p104 = scmp.eq.s32.totalorder %s24, 1
      %p105 = por %p103, %p104
      %p106 = scmp.ne.s32.totalorder %s97, %s98
      %p107 = scmp.eq.s32.totalorder %s24, 0
      %p108 = por %p106, %p107
      %p109 = scmp.ne.s32.totalorder %s97, %s98
      %p110 = scmp.eq.s32.totalorder %s25, 1
      %p111 = por %p109, %p110
      %p113 = scmp.ne.s32.totalorder %s98, %s112
      %p114 = scmp.eq.s32.totalorder %s25, 0
      %p115 = por %p113, %p114
      %s117 = sadd.s32 %s116, 1
      %p120 = scmp.eq.s32.totalorder %s19, 1
      %p121 = scmp.ne.s32.totalorder %s116, %s118
      %p122 = scmp.eq.s32.totalorder %s19, 0
      %p123 = por %p121, %p122
      %p124 = scmp.ne.s32.totalorder %s116, %s118
      %p125 = scmp.eq.s32.totalorder %s24, 1
      %p126 = por %p124, %p125
      %p127 = scmp.ne.s32.totalorder %s118, %s119
      %p128 = scmp.eq.s32.totalorder %s24, 0
      %p129 = por %p127, %p128
      %p130 = scmp.ne.s32.totalorder %s118, %s119
      %p131 = scmp.eq.s32.totalorder %s25, 1
      %p132 = por %p130, %p131
      %p134 = scmp.ne.s32.totalorder %s119, %s133
      %p135 = scmp.eq.s32.totalorder %s25, 0
      %p136 = por %p134, %p135
      %s138 = sadd.s32 %s137, 1
      %p141 = scmp.eq.s32.totalorder %s19, 1
      %p142 = scmp.ne.s32.totalorder %s137, %s139
      %p143 = scmp.eq.s32.totalorder %s19, 0
      %p144 = por %p142, %p143
      %p145 = scmp.ne.s32.totalorder %s137, %s139
      %p146 = scmp.eq.s32.totalorder %s24, 1
      %p147 = por %p145, %p146
      %p148 = scmp.ne.s32.totalorder %s139, %s140
      %p149 = scmp.eq.s32.totalorder %s24, 0
      %p150 = por %p148, %p149
      %p151 = scmp.ne.s32.totalorder %s139, %s140
      %p152 = scmp.eq.s32.totalorder %s25, 1
      %p153 = por %p151, %p152
      %p155 = scmp.ne.s32.totalorder %s140, %s154
      %p156 = scmp.eq.s32.totalorder %s25, 0
      %p157 = por %p155, %p156
      %s159 = sadd.s32 %s158, 1
      %p162 = scmp.eq.s32.totalorder %s19, 1
      %p163 = scmp.ne.s32.totalorder %s158, %s160
      %p164 = scmp.eq.s32.totalorder %s19, 0
      %p165 = por %p163, %p164
      %p166 = scmp.ne.s32.totalorder %s158, %s160
      %p167 = scmp.eq.s32.totalorder %s24, 1
      %p168 = por %p166, %p167
      %p169 = scmp.ne.s32.totalorder %s160, %s161
      %p170 = scmp.eq.s32.totalorder %s24, 0
      %p171 = por %p169, %p170
      %p172 = scmp.ne.s32.totalorder %s160, %s161
      %p173 = scmp.eq.s32.totalorder %s25, 1
      %p174 = por %p172, %p173
      %p176 = scmp.ne.s32.totalorder %s161, %s175
      %p177 = scmp.eq.s32.totalorder %s25, 0
      %p178 = por %p176, %p177
      %s180 = sadd.s32 %s179, 1
      %p183 = scmp.eq.s32.totalorder %s19, 1
      %p184 = scmp.ne.s32.totalorder %s179, %s181
      %p185 = scmp.eq.s32.totalorder %s19, 0
      %p186 = por %p184, %p185
      %p187 = scmp.ne.s32.totalorder %s179, %s181
      %p188 = scmp.eq.s32.totalorder %s24, 1
      %p189 = por %p187, %p188
      %p190 = scmp.ne.s32.totalorder %s181, %s182
      %p191 = scmp.eq.s32.totalorder %s24, 0
      %p192 = por %p190, %p191
      %p193 = scmp.ne.s32.totalorder %s181, %s182
      %p194 = scmp.eq.s32.totalorder %s25, 1
      %p195 = por %p193, %p194
      %p197 = scmp.ne.s32.totalorder %s182, %s196
      %p198 = scmp.eq.s32.totalorder %s25, 0
      %p199 = por %p197, %p198
      %s201 = sadd.s32 %s200, 1
      %p204 = scmp.eq.s32.totalorder %s19, 1
      %p205 = scmp.ne.s32.totalorder %s200, %s202
      %p206 = scmp.eq.s32.totalorder %s19, 0
      %p207 = por %p205, %p206
      %p208 = scmp.ne.s32.totalorder %s200, %s202
      %p209 = scmp.eq.s32.totalorder %s24, 1
      %p210 = por %p208, %p209
      %p211 = scmp.ne.s32.totalorder %s202, %s203
      %p212 = scmp.eq.s32.totalorder %s24, 0
      %p213 = por %p211, %p212
      %p214 = scmp.ne.s32.totalorder %s202, %s203
      %p215 = scmp.eq.s32.totalorder %s25, 1
      %p216 = por %p214, %p215
      %p218 = scmp.ne.s32.totalorder %s203, %s217
      %p219 = scmp.eq.s32.totalorder %s25, 0
      %p220 = por %p218, %p219
      %s222 = sadd.s32 %s221, 1
      %p225 = scmp.eq.s32.totalorder %s19, 1
      %p226 = scmp.ne.s32.totalorder %s221, %s223
      %p227 = scmp.eq.s32.totalorder %s19, 0
      %p228 = por %p226, %p227
      %p229 = scmp.ne.s32.totalorder %s221, %s223
      %p230 = scmp.eq.s32.totalorder %s24, 1
      %p231 = por %p229, %p230
      %p232 = scmp.ne.s32.totalorder %s223, %s224
      %p233 = scmp.eq.s32.totalorder %s24, 0
      %p234 = por %p232, %p233
      %p235 = scmp.ne.s32.totalorder %s223, %s224
      %p236 = scmp.eq.s32.totalorder %s25, 1
      %p237 = por %p235, %p236
      %p239 = scmp.ne.s32.totalorder %s224, %s238
      %p240 = scmp.eq.s32.totalorder %s25, 0
      %p241 = por %p239, %p240
      %s243 = sadd.s32 %s242, 1
      %p246 = scmp.eq.s32.totalorder %s19, 1
      %p247 = scmp.ne.s32.totalorder %s242, %s244
      %p248 = scmp.eq.s32.totalorder %s19, 0
      %p249 = por %p247, %p248
      %p250 = scmp.ne.s32.totalorder %s242, %s244
      %p251 = scmp.eq.s32.totalorder %s24, 1
      %p252 = por %p250, %p251
      %p253 = scmp.ne.s32.totalorder %s244, %s245
      %p254 = scmp.eq.s32.totalorder %s24, 0
      %p255 = por %p253, %p254
      %p256 = scmp.ne.s32.totalorder %s244, %s245
      %p257 = scmp.eq.s32.totalorder %s25, 1
      %p258 = por %p256, %p257
      %p260 = scmp.ne.s32.totalorder %s245, %s259
      %p261 = scmp.eq.s32.totalorder %s25, 0
      %p262 = por %p260, %p261
      %s264 = sadd.s32 %s263, 1
      %p267 = scmp.eq.s32.totalorder %s19, 1
      %p268 = scmp.ne.s32.totalorder %s263, %s265
      %p269 = scmp.eq.s32.totalorder %s19, 0
      %p270 = por %p268, %p269
      %p271 = scmp.ne.s32.totalorder %s263, %s265
      %p272 = scmp.eq.s32.totalorder %s24, 1
      %p273 = por %p271, %p272
      %p274 = scmp.ne.s32.totalorder %s265, %s266
      %p275 = scmp.eq.s32.totalorder %s24, 0
      %p276 = por %p274, %p275
      %p277 = scmp.ne.s32.totalorder %s265, %s266
      %p278 = scmp.eq.s32.totalorder %s25, 1
      %p279 = por %p277, %p278
      %p281 = scmp.ne.s32.totalorder %s266, %s280
      %p282 = scmp.eq.s32.totalorder %s25, 0
      %p283 = por %p281, %p282
      %s284 = ssub.s32 %s19, %s26
      %p285 = scmp.eq.s32.totalorder %s284, 0
      %s287 = sadd.s32 %s286, 1
      %s288 = scalar_select %p285, %s286, %s287
      %p291 = pneg %p285
      %p292 = scmp.eq.s32.totalorder %s19, 1
      %p293 = por %p291, %p292
      %p294 = scmp.ne.s32.totalorder %s286, %s289
      %p295 = scmp.eq.s32.totalorder %s19, 0
      %p296 = por %p294, %p295
      %p297 = scmp.ne.s32.totalorder %s286, %s289
      %p298 = scmp.eq.s32.totalorder %s24, 1
      %p299 = por %p297, %p298
      %p300 = scmp.ne.s32.totalorder %s289, %s290
      %p301 = scmp.eq.s32.totalorder %s24, 0
      %p302 = por %p300, %p301
      %p303 = scmp.ne.s32.totalorder %s289, %s290
      %p304 = scmp.eq.s32.totalorder %s25, 1
      %p305 = por %p303, %p304
      %p307 = scmp.ne.s32.totalorder %s290, %s306
      %p308 = scmp.eq.s32.totalorder %s25, 0
      %p309 = por %p307, %p308
      %p310 = scmp.le.s32.totalorder 1, %s19
      %p311 = scmp.lt.s32.totalorder %s19, 3
      %p312 = pnand %p310, %p311
      %p313 = pneg %p312
      // Predicated region
      $region9: #{tpu_custom_call.1} parent=5 // pred_check
        _
      $region10: #{tpu_custom_call.1} parent=5 // pred_check_branch
        %315 = sbr.rel (%p312) target = $region12
      $region11: #{tpu_custom_call.1} parent=5 // pred_region
        %s316 = ssub.s32 %s19, 1
        // Predicated region
        $region13: #{tpu_custom_call.1} parent=11 // pred_check
          %p317 = pneg %p66
        $region14: #{tpu_custom_call.1} parent=11 // pred_check_branch
          %319 = sbr.rel (%p317) target = $region16
        $region15: #{tpu_custom_call.1} parent=11 // pred_region
          _
        $region16: #{tpu_custom_call.1} parent=11 // pred_fallthru
          _
        // Predicated region
        $region17: #{tpu_custom_call.1} parent=11 // pred_check
          %p320 = pneg %p87
        $region18: #{tpu_custom_call.1} parent=11 // pred_check_branch
          %322 = sbr.rel (%p320) target = $region20
        $region19: #{tpu_custom_call.1} parent=11 // pred_region
          _
        $region20: #{tpu_custom_call.1} parent=11 // pred_fallthru
          _
        // Predicated region
        $region21: #{tpu_custom_call.1} parent=11 // pred_check
          %p323 = pneg %p108
        $region22: #{tpu_custom_call.1} parent=11 // pred_check_branch
          %325 = sbr.rel (%p323) target = $region24
        $region23: #{tpu_custom_call.1} parent=11 // pred_region
          %327 = vsyncadd [#allocation5], 0
          %s328 = sshll.u32 %s3, 4
          %s329 = int_to_ptr.hbm [resolvable:$true] %s328
          %s330 = sshll.u32 [#allocation4], 4
          %s331 = int_to_ptr.vmem [resolvable:$true] %s330
          %336 = dma.hbm_to_vmem [thread:$0]  %s329, 1536, %s331, [#allocation5], 256, 256, 16
        $region24: #{tpu_custom_call.1} parent=11 // pred_fallthru
          _
        // Predicated region
        $region25: #{tpu_custom_call.1} parent=11 // pred_check
          %p337 = pneg %p129
        $region26: #{tpu_custom_call.1} parent=11 // pred_check_branch
          %339 = sbr.rel (%p337) target = $region28
        $region27: #{tpu_custom_call.1} parent=11 // pred_region
          _
        $region28: #{tpu_custom_call.1} parent=11 // pred_fallthru
          _
        // Predicated region
        $region29: #{tpu_custom_call.1} parent=11 // pred_check
          %p340 = pneg %p150
        $region30: #{tpu_custom_call.1} parent=11 // pred_check_branch
          %342 = sbr.rel (%p340) target = $region32
        $region31: #{tpu_custom_call.1} parent=11 // pred_region
          _
        $region32: #{tpu_custom_call.1} parent=11 // pred_fallthru
          _
        // Predicated region
        $region33: #{tpu_custom_call.1} parent=11 // pred_check
          %p343 = pneg %p171
        $region34: #{tpu_custom_call.1} parent=11 // pred_check_branch
          %345 = sbr.rel (%p343) target = $region36
        $region35: #{tpu_custom_call.1} parent=11 // pred_region
          _
        $region36: #{tpu_custom_call.1} parent=11 // pred_fallthru
          _
        // Predicated region
        $region37: #{tpu_custom_call.1} parent=11 // pred_check
          %p346 = pneg %p192
        $region38: #{tpu_custom_call.1} parent=11 // pred_check_branch
          %348 = sbr.rel (%p346) target = $region40
        $region39: #{tpu_custom_call.1} parent=11 // pred_region
          _
        $region40: #{tpu_custom_call.1} parent=11 // pred_fallthru
          _
        // Predicated region
        $region41: #{tpu_custom_call.1} parent=11 // pred_check
          %p349 = pneg %p213
        $region42: #{tpu_custom_call.1} parent=11 // pred_check_branch
          %351 = sbr.rel (%p349) target = $region44
        $region43: #{tpu_custom_call.1} parent=11 // pred_region
          _
        $region44: #{tpu_custom_call.1} parent=11 // pred_fallthru
          _
        // Predicated region
        $region45: #{tpu_custom_call.1} parent=11 // pred_check
          %p352 = pneg %p234
        $region46: #{tpu_custom_call.1} parent=11 // pred_check_branch
          %354 = sbr.rel (%p352) target = $region48
        $region47: #{tpu_custom_call.1} parent=11 // pred_region
          _
        $region48: #{tpu_custom_call.1} parent=11 // pred_fallthru
          _
        // Predicated region
        $region49: #{tpu_custom_call.1} parent=11 // pred_check
          %p355 = pneg %p255
        $region50: #{tpu_custom_call.1} parent=11 // pred_check_branch
          %357 = sbr.rel (%p355) target = $region52
        $region51: #{tpu_custom_call.1} parent=11 // pred_region
          _
        $region52: #{tpu_custom_call.1} parent=11 // pred_fallthru
          _
        // Predicated region
        $region53: #{tpu_custom_call.1} parent=11 // pred_check
          %p358 = pneg %p276
        $region54: #{tpu_custom_call.1} parent=11 // pred_check_branch
          %360 = sbr.rel (%p358) target = $region56
        $region55: #{tpu_custom_call.1} parent=11 // pred_region
          _
        $region56: #{tpu_custom_call.1} parent=11 // pred_fallthru
          _
      $region12: #{tpu_custom_call.1} parent=5 // pred_fallthru
        _
      %p361 = scmp.lt.s32.totalorder %s19, 2
      // Predicated region
      $region57: #{tpu_custom_call.1} parent=5 // pred_check
        %p362 = pneg %p361
      $region58: #{tpu_custom_call.1} parent=5 // pred_check_branch
        %364 = sbr.rel (%p362) target = $region60
      $region59: #{tpu_custom_call.1} parent=5 // pred_region
        // Predicated region
        $region61: #{tpu_custom_call.1} parent=59 // pred_check
          %p365 = pneg %p39
        $region62: #{tpu_custom_call.1} parent=59 // pred_check_branch
          %367 = sbr.rel (%p365) target = $region64
        $region63: #{tpu_custom_call.1} parent=59 // pred_region
          %p368 = scmp.lt.s32.totalorder %s19, 1
          %s369 = scalar_select %p368, %s19, 1
          %s370 = smul.addr %s369, 2
          %s371 = smul.addr %s370, 4
          %s372 = scalar_lea.vmem %s0, %s371
        $region64: #{tpu_custom_call.1} parent=59 // pred_fallthru
          _
      $region60: #{tpu_custom_call.1} parent=5 // pred_fallthru
        _
      %p373 = scmp.le.s32.totalorder 1, %s19
      %p374 = scmp.lt.s32.totalorder %s19, 3
      %p375 = pnand %p373, %p374
      %p376 = pneg %p375
      // Predicated region
      $region65: #{tpu_custom_call.1} parent=5 // pred_check
        _
      $region66: #{tpu_custom_call.1} parent=5 // pred_check_branch
        %378 = sbr.rel (%p375) target = $region68
      $region67: #{tpu_custom_call.1} parent=5 // pred_region
        %s379 = ssub.s32 %s19, 1
        // Predicated region
        $region69: #{tpu_custom_call.1} parent=67 // pred_check
          %p380 = pneg %p108
        $region70: #{tpu_custom_call.1} parent=67 // pred_check_branch
          %382 = sbr.rel (%p380) target = $region72
        $region71: #{tpu_custom_call.1} parent=67 // pred_region
          %384 = dma.done [#allocation5], 1536
        $region72: #{tpu_custom_call.1} parent=67 // pred_fallthru
          _
        %p385 = scmp.lt.s32.totalorder %s24, 1
        %s386 = scalar_select %p385, %s24, 1
        %s387 = smul.addr %s386, 2
        %s388 = smul.addr %s387, 4
        %s389 = scalar_lea.vmem %s0, %s388
        %p390 = pneg %p45
        %p391 = pneg %p42
        %p392 = pneg %p66
        %p393 = pneg %p63
        %p394 = pneg %p87
        %p395 = pneg %p84
        %p396 = pneg %p108
        %p397 = pneg %p105
        %p398 = pneg %p129
        %p399 = pneg %p126
        %p400 = pneg %p150
        %p401 = pneg %p147
        %p402 = pneg %p171
        %p403 = pneg %p168
        %p404 = pneg %p192
        %p405 = pneg %p189
        %p406 = pneg %p213
        %p407 = pneg %p210
        %p408 = pneg %p234
        %p409 = pneg %p231
        %p410 = pneg %p255
        %p411 = pneg %p252
        %p412 = pneg %p276
        %p413 = pneg %p273
        %p414 = pneg %p302
        %p415 = pneg %p299
        %p416 = scmp.lt.s32.totalorder %s24, 1
        %s417 = scalar_select %p416, %s24, 1
        %s418 = smul.addr %s417, 4
        %s419 = smul.addr %s418, 8
        %s420 = scalar_lea.vmem %s12, %s419
        %p421 = scmp.lt.s32.totalorder %s24, 1
        %s422 = scalar_select %p421, %s24, 1
        %s423 = smul.addr %s422, 2
        %s424 = smul.addr %s423, 4
        %s425 = scalar_lea.vmem %s0, %s424
        %p426 = scmp.lt.s32.totalorder %s24, 1
        %s427 = scalar_select %p426, %s24, 1
        %s428 = smul.addr %s427, 4
        %s429 = smul.addr %s428, 8
        %s430 = scalar_lea.vmem %s12, %s429
        %v431 = vld [vmem:[%s425] sm:$0xff]
        %v432 = vld [vmem:[%s1] sm:$0xff]
        %v433 = vld [vmem:[%s1 + $0x8] sm:$0xff]
        %v434 = vld [vmem:[%s1 + $0x10] sm:$0xff]
        %v435 = vld [vmem:[%s2] sm:$0xff]
        %v436 = vld [vmem:[%s2 + $0x8] sm:$0xff]
        %v437 = vld [vmem:[%s2 + $0x10] sm:$0xff]
        %439 = vset.pattern.permute.xlu0 0
        %440 = vperm.xlu0 %439, %v435
        %v441 = vpop.permute.xlu0 %440
        %444 = vset.pattern.permute.xlu0 0
        %445 = vperm.xlu0 %444, %v436
        %v446 = vpop.permute.xlu0 %445
        %449 = vset.pattern.permute.xlu0 0
        %450 = vperm.xlu0 %449, %v437
        %v451 = vpop.permute.xlu0 %450
        %454 = vst [vmem:[#allocation1] ss:$2 sm:$0xff] %v431
        %v455 = vld.sshfl [vmem:[#allocation1] sm:$0xff pattern:$0x75316420]
        %v456 = vld.sshfl [vmem:[#allocation1 + $0x8] sm:$0xff pattern:$0x75316420]
        %vm457 = vcmask 31744
        %v459 = vsel %vm457, %v432, 0
        %v462 = vsel %vm457, %v433, 0
        %v465 = vsel %vm457, %v434, 0
        %vm467 = vcmask 1043456
        %v468 = vsel %vm467, %v455, 0
        %v470 = vsel %vm467, %v456, 0
        %472 = vmatpush.msra.mxu0 0.0
        %473 = vmatpush.msra.mxu0 0.0
        %474 = vmatpush.msra.mxu0 0.0
        %475 = vmatpush.msra.mxu0 0.0
        %476 = vmatpush.msra.mxu0 0.0
        %477 = vmatpush.msra.mxu0 0.0
        %478 = vmatpush.msra.mxu0 0.0
        %479 = vmatpush.msra.mxu0 0.0
        %480 = vmatpush.msra.mxu0 0.0
        %481 = vmatpush.msra.mxu0 0.0
        %482 = vmatpush.msra.mxu0 0.0
        %483 = vmatpush.msra.mxu0 0.0
        %484 = vmatpush.msra.mxu0 0.0
        %485 = vmatpush.msra.mxu0 0.0
        %486 = vmatpush.msra.mxu0 0.0
        %487 = vmatpush.msra.mxu0 %v468
        %488 = vmatmul.f32.gmra.mxu0 %v459
        %v489 = vpop.f32.mrf.mxu0
        %v490 = vadd.f32 %v441, %v489
        %491 = vmatmul.f32.gmra.mxu0 %v462
        %v492 = vpop.f32.mrf.mxu0
        %v493 = vadd.f32 %v446, %v492
        %494 = vmatmul.f32.gmra.mxu0 %v465
        %v495 = vpop.f32.mrf.mxu0
        %v496 = vadd.f32 %v451, %v495
        %497 = vdwg.mxu0
        %498 = vmatpush.msra.mxu0 0.0
        %499 = vmatpush.msra.mxu0 0.0
        %500 = vmatpush.msra.mxu0 0.0
        %501 = vmatpush.msra.mxu0 0.0
        %502 = vmatpush.msra.mxu0 0.0
        %503 = vmatpush.msra.mxu0 0.0
        %504 = vmatpush.msra.mxu0 0.0
        %505 = vmatpush.msra.mxu0 0.0
        %506 = vmatpush.msra.mxu0 0.0
        %507 = vmatpush.msra.mxu0 0.0
        %508 = vmatpush.msra.mxu0 0.0
        %509 = vmatpush.msra.mxu0 0.0
        %510 = vmatpush.msra.mxu0 0.0
        %511 = vmatpush.msra.mxu0 0.0
        %512 = vmatpush.msra.mxu0 0.0
        %513 = vmatpush.msra.mxu0 %v470
        %514 = vmatmul.f32.gmra.mxu0 %v459
        %v515 = vpop.f32.mrf.mxu0
        %v516 = vadd.f32 %v441, %v515
        %517 = vmatmul.f32.gmra.mxu0 %v462
        %v518 = vpop.f32.mrf.mxu0
        %v519 = vadd.f32 %v446, %v518
        %520 = vmatmul.f32.gmra.mxu0 %v465
        %v521 = vpop.f32.mrf.mxu0
        %v522 = vadd.f32 %v451, %v521
        %523 = vdwg.mxu0
        %v524 = vmax.f32 %v490, 0.0
        %v525 = vmax.f32 %v516, 0.0
        %v526 = vmax.f32 %v493, 0.0
        %v527 = vmax.f32 %v519, 0.0
        %v528 = vmax.f32 %v496, 0.0
        %v529 = vmax.f32 %v522, 0.0
        %530 = vst [vmem:[#allocation2 + $0xc0] sm:$0xff] %v524
        %531 = vst [vmem:[#allocation2 + $0xc8] sm:$0xff] %v525
        %532 = vst [vmem:[#allocation2 + $0xd0] sm:$0xff] %v526
        %533 = vst [vmem:[#allocation2 + $0xd8] sm:$0xff] %v527
        %534 = vst [vmem:[#allocation2 + $0xe0] sm:$0xff] %v528
        %535 = vst [vmem:[#allocation2 + $0xe8] sm:$0xff] %v529
        %v536 = vld [vmem:[#allocation2 + $0xc0] sm:$0xff]
        %v537 = vld [vmem:[#allocation2 + $0xc8] sm:$0xff]
        %v538 = vld [vmem:[#allocation2 + $0xd0] sm:$0xff]
        %v539 = vld [vmem:[#allocation2 + $0xd8] sm:$0xff]
        %v540 = vld [vmem:[#allocation2 + $0xe0] sm:$0xff]
        %v541 = vld [vmem:[#allocation2 + $0xe8] sm:$0xff]
        %542 = vrot.lane.b32.xlu0 %v536, 17
        %v543 = vpop.permute.xlu0 %542
        %544 = vrot.lane.b32.xlu0 %v538, 17
        %v545 = vpop.permute.xlu0 %544
        %546 = vrot.lane.b32.xlu0 %v540, 17
        %v547 = vpop.permute.xlu0 %546
        %548 = vrot.lane.b32.xlu0 %v537, 17
        %v549 = vpop.permute.xlu0 %548
        %550 = vrot.lane.b32.xlu0 %v539, 17
        %v551 = vpop.permute.xlu0 %550
        %552 = vrot.lane.b32.xlu0 %v541, 17
        %v553 = vpop.permute.xlu0 %552
        %v554 = vlaneseq
        %v555 = vand.u32 %v554, 127
        %vm556 = vcmp.lt.s32.totalorder %v555, 17
        %v557 = vsel %vm556, %v543, %v549
        %v558 = vsel %vm556, %v545, %v551
        %v559 = vsel %vm556, %v547, %v553
        %v560 = vsel %vm556, %v549, %v543
        %v561 = vsel %vm556, %v551, %v545
        %v562 = vsel %vm556, %v553, %v547
        %v563 = vld [vmem:[%s11] ss:$8 sm:$0x3]
        %v565 = vperm.slane %v563, 0
        %v566 = vperm.slane %v563, 1
        %v569 = vmul.f32 %v560, %v565
        %v570 = vmul.f32 %v557, %v566
        %v571 = vmul.f32 %v561, %v565
        %v572 = vmul.f32 %v558, %v566
        %v573 = vmul.f32 %v562, %v565
        %v574 = vmul.f32 %v559, %v566
        %575 = vst [vmem:[#allocation2] sm:$0xff] %v569
        %576 = vst [vmem:[#allocation2 + $0x8] sm:$0xff] %v570
        %577 = vst [vmem:[#allocation2 + $0x10] sm:$0xff] %v571
        %578 = vst [vmem:[#allocation2 + $0x18] sm:$0xff] %v572
        %579 = vst [vmem:[#allocation2 + $0x20] sm:$0xff] %v573
        %580 = vst [vmem:[#allocation2 + $0x28] sm:$0xff] %v574
        %v581 = vld [vmem:[#allocation2 + $0xc0] sm:$0xff]
        %v582 = vld [vmem:[#allocation2 + $0xc8] sm:$0xff]
        %v583 = vld [vmem:[#allocation2 + $0xd0] sm:$0xff]
        %v584 = vld [vmem:[#allocation2 + $0xd8] sm:$0xff]
        %v585 = vld [vmem:[#allocation2 + $0xe0] sm:$0xff]
        %v586 = vld [vmem:[#allocation2 + $0xe8] sm:$0xff]
        %587 = vrot.lane.b32.xlu0 %v581, 16
        %v588 = vpop.permute.xlu0 %587
        %589 = vrot.lane.b32.xlu0 %v583, 16
        %v590 = vpop.permute.xlu0 %589
        %591 = vrot.lane.b32.xlu0 %v585, 16
        %v592 = vpop.permute.xlu0 %591
        %593 = vrot.lane.b32.xlu0 %v582, 16
        %v594 = vpop.permute.xlu0 %593
        %595 = vrot.lane.b32.xlu0 %v584, 16
        %v596 = vpop.permute.xlu0 %595
        %597 = vrot.lane.b32.xlu0 %v586, 16
        %v598 = vpop.permute.xlu0 %597
        %vm599 = vcmp.lt.s32.totalorder %v555, 16
        %v600 = vsel %vm599, %v588, %v594
        %v601 = vsel %vm599, %v590, %v596
        %v602 = vsel %vm599, %v592, %v598
        %v603 = vsel %vm599, %v594, %v588
        %v604 = vsel %vm599, %v596, %v590
        %v605 = vsel %vm599, %v598, %v592
        %s606 = scalar_lea.vmem %s11, 1
        %v607 = vld [vmem:[%s606] ss:$8 sm:$0x3]
        %v609 = vperm.slane %v607, 0
        %v610 = vperm.slane %v607, 1
        %v613 = vmul.f32 %v603, %v609
        %v614 = vmul.f32 %v600, %v610
        %v615 = vmul.f32 %v604, %v609
        %v616 = vmul.f32 %v601, %v610
        %v617 = vmul.f32 %v605, %v609
        %v618 = vmul.f32 %v602, %v610
        %619 = vst [vmem:[#allocation2 + $0x30] sm:$0xff] %v613
        %620 = vst [vmem:[#allocation2 + $0x38] sm:$0xff] %v614
        %621 = vst [vmem:[#allocation2 + $0x40] sm:$0xff] %v615
        %622 = vst [vmem:[#allocation2 + $0x48] sm:$0xff] %v616
        %623 = vst [vmem:[#allocation2 + $0x50] sm:$0xff] %v617
        %624 = vst [vmem:[#allocation2 + $0x58] sm:$0xff] %v618
        %v625 = vld [vmem:[#allocation2 + $0xc0] sm:$0xff]
        %v626 = vld [vmem:[#allocation2 + $0xc8] sm:$0xff]
        %v627 = vld [vmem:[#allocation2 + $0xd0] sm:$0xff]
        %v628 = vld [vmem:[#allocation2 + $0xd8] sm:$0xff]
        %v629 = vld [vmem:[#allocation2 + $0xe0] sm:$0xff]
        %v630 = vld [vmem:[#allocation2 + $0xe8] sm:$0xff]
        %631 = vrot.lane.b32.xlu0 %v625, 15
        %v632 = vpop.permute.xlu0 %631
        %633 = vrot.lane.b32.xlu0 %v627, 15
        %v634 = vpop.permute.xlu0 %633
        %635 = vrot.lane.b32.xlu0 %v629, 15
        %v636 = vpop.permute.xlu0 %635
        %637 = vrot.lane.b32.xlu0 %v626, 15
        %v638 = vpop.permute.xlu0 %637
        %639 = vrot.lane.b32.xlu0 %v628, 15
        %v640 = vpop.permute.xlu0 %639
        %641 = vrot.lane.b32.xlu0 %v630, 15
        %v642 = vpop.permute.xlu0 %641
        %vm643 = vcmp.lt.s32.totalorder %v555, 15
        %v644 = vsel %vm643, %v632, %v638
        %v645 = vsel %vm643, %v634, %v640
        %v646 = vsel %vm643, %v636, %v642
        %v647 = vsel %vm643, %v638, %v632
        %v648 = vsel %vm643, %v640, %v634
        %v649 = vsel %vm643, %v642, %v636
        %s650 = scalar_lea.vmem %s11, 2
        %v651 = vld [vmem:[%s650] ss:$8 sm:$0x3]
        %v653 = vperm.slane %v651, 0
        %v654 = vperm.slane %v651, 1
        %v657 = vmul.f32 %v647, %v653
        %v658 = vmul.f32 %v644, %v654
        %v659 = vmul.f32 %v648, %v653
        %v660 = vmul.f32 %v645, %v654
        %v661 = vmul.f32 %v649, %v653
        %v662 = vmul.f32 %v646, %v654
        %663 = vst [vmem:[#allocation2 + $0x60] sm:$0xff] %v657
        %664 = vst [vmem:[#allocation2 + $0x68] sm:$0xff] %v658
        %665 = vst [vmem:[#allocation2 + $0x70] sm:$0xff] %v659
        %666 = vst [vmem:[#allocation2 + $0x78] sm:$0xff] %v660
        %667 = vst [vmem:[#allocation2 + $0x80] sm:$0xff] %v661
        %668 = vst [vmem:[#allocation2 + $0x88] sm:$0xff] %v662
        %v669 = vld [vmem:[#allocation2 + $0xc0] sm:$0xff]
        %v670 = vld [vmem:[#allocation2 + $0xc8] sm:$0xff]
        %v671 = vld [vmem:[#allocation2 + $0xd0] sm:$0xff]
        %v672 = vld [vmem:[#allocation2 + $0xd8] sm:$0xff]
        %v673 = vld [vmem:[#allocation2 + $0xe0] sm:$0xff]
        %v674 = vld [vmem:[#allocation2 + $0xe8] sm:$0xff]
        %675 = vrot.lane.b32.xlu0 %v669, 1
        %v676 = vpop.permute.xlu0 %675
        %677 = vrot.lane.b32.xlu0 %v671, 1
        %v678 = vpop.permute.xlu0 %677
        %679 = vrot.lane.b32.xlu0 %v673, 1
        %v680 = vpop.permute.xlu0 %679
        %681 = vrot.lane.b32.xlu0 %v670, 1
        %v682 = vpop.permute.xlu0 %681
        %683 = vrot.lane.b32.xlu0 %v672, 1
        %v684 = vpop.permute.xlu0 %683
        %685 = vrot.lane.b32.xlu0 %v674, 1
        %v686 = vpop.permute.xlu0 %685
        %vm687 = vcmp.lt.s32.totalorder %v555, 1
        %v688 = vsel %vm687, %v676, %v682
        %v689 = vsel %vm687, %v678, %v684
        %v690 = vsel %vm687, %v680, %v686
        %v691 = vsel %vm687, %v682, %v676
        %v692 = vsel %vm687, %v684, %v678
        %v693 = vsel %vm687, %v686, %v680
        %s694 = scalar_lea.vmem %s11, 3
        %v695 = vld [vmem:[%s694] ss:$8 sm:$0x3]
        %v697 = vperm.slane %v695, 0
        %v698 = vperm.slane %v695, 1
        %v701 = vmul.f32 %v691, %v697
        %v702 = vmul.f32 %v688, %v698
        %v703 = vmul.f32 %v692, %v697
        %v704 = vmul.f32 %v689, %v698
        %v705 = vmul.f32 %v693, %v697
        %v706 = vmul.f32 %v690, %v698
        %707 = vst [vmem:[#allocation2 + $0x90] sm:$0xff] %v701
        %708 = vst [vmem:[#allocation2 + $0x98] sm:$0xff] %v702
        %709 = vst [vmem:[#allocation2 + $0xa0] sm:$0xff] %v703
        %710 = vst [vmem:[#allocation2 + $0xa8] sm:$0xff] %v704
        %711 = vst [vmem:[#allocation2 + $0xb0] sm:$0xff] %v705
        %712 = vst [vmem:[#allocation2 + $0xb8] sm:$0xff] %v706
        %v713 = vld [vmem:[#allocation2 + $0xc0] sm:$0xff]
        %v714 = vld [vmem:[#allocation2 + $0xc8] sm:$0xff]
        %v715 = vld [vmem:[#allocation2 + $0xd0] sm:$0xff]
        %v716 = vld [vmem:[#allocation2 + $0xd8] sm:$0xff]
        %v717 = vld [vmem:[#allocation2 + $0xe0] sm:$0xff]
        %v718 = vld [vmem:[#allocation2 + $0xe8] sm:$0xff]
        %719 = vrot.lane.b32.xlu0 %v713, 127
        %v720 = vpop.permute.xlu0 %719
        %721 = vrot.lane.b32.xlu0 %v715, 127
        %v722 = vpop.permute.xlu0 %721
        %723 = vrot.lane.b32.xlu0 %v717, 127
        %v724 = vpop.permute.xlu0 %723
        %725 = vrot.lane.b32.xlu0 %v714, 127
        %v726 = vpop.permute.xlu0 %725
        %727 = vrot.lane.b32.xlu0 %v716, 127
        %v728 = vpop.permute.xlu0 %727
        %729 = vrot.lane.b32.xlu0 %v718, 127
        %v730 = vpop.permute.xlu0 %729
        %vm731 = vcmp.lt.s32.totalorder %v555, 127
        %v732 = vsel %vm731, %v720, %v726
        %v733 = vsel %vm731, %v722, %v728
        %v734 = vsel %vm731, %v724, %v730
        %v735 = vsel %vm731, %v726, %v720
        %v736 = vsel %vm731, %v728, %v722
        %v737 = vsel %vm731, %v730, %v724
        %s738 = scalar_lea.vmem %s11, 5
        %v739 = vld [vmem:[%s738] ss:$8 sm:$0x3]
        %v741 = vperm.slane %v739, 0
        %v742 = vperm.slane %v739, 1
        %v745 = vmul.f32 %v732, %v741
        %v746 = vmul.f32 %v735, %v742
        %v747 = vmul.f32 %v733, %v741
        %v748 = vmul.f32 %v736, %v742
        %v749 = vmul.f32 %v734, %v741
        %v750 = vmul.f32 %v737, %v742
        %751 = vst [vmem:[#allocation2 + $0xf0] sm:$0xff] %v745
        %752 = vst [vmem:[#allocation2 + $0xf8] sm:$0xff] %v746
        %753 = vst [vmem:[#allocation2 + $0x100] sm:$0xff] %v747
        %754 = vst [vmem:[#allocation2 + $0x108] sm:$0xff] %v748
        %755 = vst [vmem:[#allocation2 + $0x110] sm:$0xff] %v749
        %756 = vst [vmem:[#allocation2 + $0x118] sm:$0xff] %v750
        %v757 = vld [vmem:[#allocation2 + $0xc0] sm:$0xff]
        %v758 = vld [vmem:[#allocation2 + $0xc8] sm:$0xff]
        %v759 = vld [vmem:[#allocation2 + $0xd0] sm:$0xff]
        %v760 = vld [vmem:[#allocation2 + $0xd8] sm:$0xff]
        %v761 = vld [vmem:[#allocation2 + $0xe0] sm:$0xff]
        %v762 = vld [vmem:[#allocation2 + $0xe8] sm:$0xff]
        %763 = vrot.lane.b32.xlu0 %v757, 113
        %v764 = vpop.permute.xlu0 %763
        %765 = vrot.lane.b32.xlu0 %v759, 113
        %v766 = vpop.permute.xlu0 %765
        %767 = vrot.lane.b32.xlu0 %v761, 113
        %v768 = vpop.permute.xlu0 %767
        %769 = vrot.lane.b32.xlu0 %v758, 113
        %v770 = vpop.permute.xlu0 %769
        %771 = vrot.lane.b32.xlu0 %v760, 113
        %v772 = vpop.permute.xlu0 %771
        %773 = vrot.lane.b32.xlu0 %v762, 113
        %v774 = vpop.permute.xlu0 %773
        %vm775 = vcmp.lt.s32.totalorder %v555, 113
        %v776 = vsel %vm775, %v764, %v770
        %v777 = vsel %vm775, %v766, %v772
        %v778 = vsel %vm775, %v768, %v774
        %v779 = vsel %vm775, %v770, %v764
        %v780 = vsel %vm775, %v772, %v766
        %v781 = vsel %vm775, %v774, %v768
        %s782 = scalar_lea.vmem %s11, 6
        %v783 = vld [vmem:[%s782] ss:$8 sm:$0x3]
        %v785 = vperm.slane %v783, 0
        %v786 = vperm.slane %v783, 1
        %v789 = vmul.f32 %v776, %v785
        %v790 = vmul.f32 %v779, %v786
        %v791 = vmul.f32 %v777, %v785
        %v792 = vmul.f32 %v780, %v786
        %v793 = vmul.f32 %v778, %v785
        %v794 = vmul.f32 %v781, %v786
        %795 = vst [vmem:[#allocation2 + $0x120] sm:$0xff] %v789
        %796 = vst [vmem:[#allocation2 + $0x128] sm:$0xff] %v790
        %797 = vst [vmem:[#allocation2 + $0x130] sm:$0xff] %v791
        %798 = vst [vmem:[#allocation2 + $0x138] sm:$0xff] %v792
        %799 = vst [vmem:[#allocation2 + $0x140] sm:$0xff] %v793
        %800 = vst [vmem:[#allocation2 + $0x148] sm:$0xff] %v794
        %v801 = vld [vmem:[#allocation2 + $0xc0] sm:$0xff]
        %v802 = vld [vmem:[#allocation2 + $0xc8] sm:$0xff]
        %v803 = vld [vmem:[#allocation2 + $0xd0] sm:$0xff]
        %v804 = vld [vmem:[#allocation2 + $0xd8] sm:$0xff]
        %v805 = vld [vmem:[#allocation2 + $0xe0] sm:$0xff]
        %v806 = vld [vmem:[#allocation2 + $0xe8] sm:$0xff]
        %807 = vrot.lane.b32.xlu0 %v801, 112
        %v808 = vpop.permute.xlu0 %807
        %809 = vrot.lane.b32.xlu0 %v803, 112
        %v810 = vpop.permute.xlu0 %809
        %811 = vrot.lane.b32.xlu0 %v805, 112
        %v812 = vpop.permute.xlu0 %811
        %813 = vrot.lane.b32.xlu0 %v802, 112
        %v814 = vpop.permute.xlu0 %813
        %815 = vrot.lane.b32.xlu0 %v804, 112
        %v816 = vpop.permute.xlu0 %815
        %817 = vrot.lane.b32.xlu0 %v806, 112
        %v818 = vpop.permute.xlu0 %817
        %vm819 = vcmp.lt.s32.totalorder %v555, 112
        %v820 = vsel %vm819, %v808, %v814
        %v821 = vsel %vm819, %v810, %v816
        %v822 = vsel %vm819, %v812, %v818
        %v823 = vsel %vm819, %v814, %v808
        %v824 = vsel %vm819, %v816, %v810
        %v825 = vsel %vm819, %v818, %v812
        %s826 = scalar_lea.vmem %s11, 7
        %v827 = vld [vmem:[%s826] ss:$8 sm:$0x3]
        %v829 = vperm.slane %v827, 0
        %v830 = vperm.slane %v827, 1
        %v833 = vmul.f32 %v820, %v829
        %v834 = vmul.f32 %v823, %v830
        %v835 = vmul.f32 %v821, %v829
        %v836 = vmul.f32 %v824, %v830
        %v837 = vmul.f32 %v822, %v829
        %v838 = vmul.f32 %v825, %v830
        %839 = vst [vmem:[#allocation2 + $0x150] sm:$0xff] %v833
        %840 = vst [vmem:[#allocation2 + $0x158] sm:$0xff] %v834
        %841 = vst [vmem:[#allocation2 + $0x160] sm:$0xff] %v835
        %842 = vst [vmem:[#allocation2 + $0x168] sm:$0xff] %v836
        %843 = vst [vmem:[#allocation2 + $0x170] sm:$0xff] %v837
        %844 = vst [vmem:[#allocation2 + $0x178] sm:$0xff] %v838
        %v845 = vld [vmem:[#allocation2 + $0xc0] sm:$0xff]
        %v846 = vld [vmem:[#allocation2 + $0xc8] sm:$0xff]
        %v847 = vld [vmem:[#allocation2 + $0xd0] sm:$0xff]
        %v848 = vld [vmem:[#allocation2 + $0xd8] sm:$0xff]
        %v849 = vld [vmem:[#allocation2 + $0xe0] sm:$0xff]
        %v850 = vld [vmem:[#allocation2 + $0xe8] sm:$0xff]
        %851 = vrot.lane.b32.xlu0 %v845, 111
        %v852 = vpop.permute.xlu0 %851
        %853 = vrot.lane.b32.xlu0 %v847, 111
        %v854 = vpop.permute.xlu0 %853
        %855 = vrot.lane.b32.xlu0 %v849, 111
        %v856 = vpop.permute.xlu0 %855
        %857 = vrot.lane.b32.xlu0 %v846, 111
        %v858 = vpop.permute.xlu0 %857
        %859 = vrot.lane.b32.xlu0 %v848, 111
        %v860 = vpop.permute.xlu0 %859
        %861 = vrot.lane.b32.xlu0 %v850, 111
        %v862 = vpop.permute.xlu0 %861
        %vm863 = vcmp.lt.s32.totalorder %v555, 111
        %v864 = vsel %vm863, %v852, %v858
        %v865 = vsel %vm863, %v854, %v860
        %v866 = vsel %vm863, %v856, %v862
        %v867 = vsel %vm863, %v858, %v852
        %v868 = vsel %vm863, %v860, %v854
        %v869 = vsel %vm863, %v862, %v856
        %s870 = scalar_lea.vmem %s11, 16
        %v871 = vld [vmem:[%s870] ss:$8 sm:$0x3]
        %v873 = vperm.slane %v871, 0
        %v874 = vperm.slane %v871, 1
        %v877 = vmul.f32 %v864, %v873
        %v878 = vmul.f32 %v867, %v874
        %v879 = vmul.f32 %v865, %v873
        %v880 = vmul.f32 %v868, %v874
        %v881 = vmul.f32 %v866, %v873
        %v882 = vmul.f32 %v869, %v874
        %883 = vst [vmem:[#allocation2 + $0x180] sm:$0xff] %v877
        %884 = vst [vmem:[#allocation2 + $0x188] sm:$0xff] %v878
        %885 = vst [vmem:[#allocation2 + $0x190] sm:$0xff] %v879
        %886 = vst [vmem:[#allocation2 + $0x198] sm:$0xff] %v880
        %887 = vst [vmem:[#allocation2 + $0x1a0] sm:$0xff] %v881
        %888 = vst [vmem:[#allocation2 + $0x1a8] sm:$0xff] %v882
        %v889 = vld [vmem:[#allocation4] sm:$0xff]
        %v890 = vld [vmem:[#allocation4 + $0x8] sm:$0xff]
        %v891 = vld [vmem:[#allocation4 + $0x10] sm:$0xff]
        %v892 = vld [vmem:[#allocation4 + $0x18] sm:$0xff]
        %v893 = vld [vmem:[#allocation4 + $0x20] sm:$0xff]
        %v894 = vld [vmem:[#allocation4 + $0x28] sm:$0xff]
        %v895 = vld [vmem:[#allocation4 + $0x30] sm:$0xff]
        %v896 = vld [vmem:[#allocation4 + $0x38] sm:$0xff]
        %v897 = vld [vmem:[#allocation4 + $0x40] sm:$0xff]
        %v898 = vld [vmem:[#allocation4 + $0x48] sm:$0xff]
        %v899 = vld [vmem:[#allocation4 + $0x50] sm:$0xff]
        %v900 = vld [vmem:[#allocation4 + $0x58] sm:$0xff]
        %v901 = vld [vmem:[#allocation2] sm:$0xff]
        %v902 = vld [vmem:[#allocation2 + $0x8] sm:$0xff]
        %v903 = vld [vmem:[#allocation2 + $0x10] sm:$0xff]
        %v904 = vld [vmem:[#allocation2 + $0x18] sm:$0xff]
        %v905 = vld [vmem:[#allocation2 + $0x20] sm:$0xff]
        %v906 = vld [vmem:[#allocation2 + $0x28] sm:$0xff]
        %v907 = vld [vmem:[#allocation2 + $0x30] sm:$0xff]
        %v908 = vld [vmem:[#allocation2 + $0x38] sm:$0xff]
        %v909 = vld [vmem:[#allocation2 + $0x40] sm:$0xff]
        %v910 = vld [vmem:[#allocation2 + $0x48] sm:$0xff]
        %v911 = vld [vmem:[#allocation2 + $0x50] sm:$0xff]
        %v912 = vld [vmem:[#allocation2 + $0x58] sm:$0xff]
        %v913 = vld [vmem:[#allocation2 + $0x60] sm:$0xff]
        %v914 = vld [vmem:[#allocation2 + $0x68] sm:$0xff]
        %v915 = vld [vmem:[#allocation2 + $0x70] sm:$0xff]
        %v916 = vld [vmem:[#allocation2 + $0x78] sm:$0xff]
        %v917 = vld [vmem:[#allocation2 + $0x80] sm:$0xff]
        %v918 = vld [vmem:[#allocation2 + $0x88] sm:$0xff]
        %v919 = vld [vmem:[#allocation2 + $0x90] sm:$0xff]
        %v920 = vld [vmem:[#allocation2 + $0x98] sm:$0xff]
        %v921 = vld [vmem:[#allocation2 + $0xa0] sm:$0xff]
        %v922 = vld [vmem:[#allocation2 + $0xa8] sm:$0xff]
        %v923 = vld [vmem:[#allocation2 + $0xb0] sm:$0xff]
        %v924 = vld [vmem:[#allocation2 + $0xb8] sm:$0xff]
        %v925 = vld [vmem:[#allocation2 + $0xc0] sm:$0xff]
        %v926 = vld [vmem:[#allocation2 + $0xc8] sm:$0xff]
        %v927 = vld [vmem:[#allocation2 + $0xd0] sm:$0xff]
        %v928 = vld [vmem:[#allocation2 + $0xd8] sm:$0xff]
        %v929 = vld [vmem:[#allocation2 + $0xe0] sm:$0xff]
        %v930 = vld [vmem:[#allocation2 + $0xe8] sm:$0xff]
        %v931 = vld [vmem:[#allocation2 + $0xf0] sm:$0xff]
        %v932 = vld [vmem:[#allocation2 + $0xf8] sm:$0xff]
        %v933 = vld [vmem:[#allocation2 + $0x100] sm:$0xff]
        %v934 = vld [vmem:[#allocation2 + $0x108] sm:$0xff]
        %v935 = vld [vmem:[#allocation2 + $0x110] sm:$0xff]
        %v936 = vld [vmem:[#allocation2 + $0x118] sm:$0xff]
        %v937 = vld [vmem:[#allocation2 + $0x120] sm:$0xff]
        %v938 = vld [vmem:[#allocation2 + $0x128] sm:$0xff]
        %v939 = vld [vmem:[#allocation2 + $0x130] sm:$0xff]
        %v940 = vld [vmem:[#allocation2 + $0x138] sm:$0xff]
        %v941 = vld [vmem:[#allocation2 + $0x140] sm:$0xff]
        %v942 = vld [vmem:[#allocation2 + $0x148] sm:$0xff]
        %v943 = vld [vmem:[#allocation2 + $0x150] sm:$0xff]
        %v944 = vld [vmem:[#allocation2 + $0x158] sm:$0xff]
        %v945 = vld [vmem:[#allocation2 + $0x160] sm:$0xff]
        %v946 = vld [vmem:[#allocation2 + $0x168] sm:$0xff]
        %v947 = vld [vmem:[#allocation2 + $0x170] sm:$0xff]
        %v948 = vld [vmem:[#allocation2 + $0x178] sm:$0xff]
        %v949 = vld [vmem:[#allocation2 + $0x180] sm:$0xff]
        %v950 = vld [vmem:[#allocation2 + $0x188] sm:$0xff]
        %v951 = vld [vmem:[#allocation2 + $0x190] sm:$0xff]
        %v952 = vld [vmem:[#allocation2 + $0x198] sm:$0xff]
        %v953 = vld [vmem:[#allocation2 + $0x1a0] sm:$0xff]
        %v954 = vld [vmem:[#allocation2 + $0x1a8] sm:$0xff]
        %v955 = vld [vmem:[%s4] sm:$0xff]
        %v956 = vld [vmem:[%s4 + $0x8] sm:$0xff]
        %v957 = vld [vmem:[%s4 + $0x10] sm:$0xff]
        %v958 = vld [vmem:[%s4 + $0x18] sm:$0xff]
        %v959 = vld [vmem:[%s4 + $0x20] sm:$0xff]
        %v960 = vld [vmem:[%s4 + $0x28] sm:$0xff]
        %962 = vset.pattern.permute.xlu0 0
        %963 = vperm.xlu0 %962, %v955
        %v964 = vpop.permute.xlu0 %963
        %967 = vset.pattern.permute.xlu0 0
        %968 = vperm.xlu0 %967, %v956
        %v969 = vpop.permute.xlu0 %968
        %972 = vset.pattern.permute.xlu0 0
        %973 = vperm.xlu0 %972, %v957
        %v974 = vpop.permute.xlu0 %973
        %977 = vset.pattern.permute.xlu0 0
        %978 = vperm.xlu0 %977, %v958
        %v979 = vpop.permute.xlu0 %978
        %982 = vset.pattern.permute.xlu0 0
        %983 = vperm.xlu0 %982, %v959
        %v984 = vpop.permute.xlu0 %983
        %987 = vset.pattern.permute.xlu0 0
        %988 = vperm.xlu0 %987, %v960
        %v989 = vpop.permute.xlu0 %988
        %vm991 = vcmask 719872
        %v993 = vsel %vm991, %v890, 0
        %v996 = vsel %vm991, %v892, 0
        %v999 = vsel %vm991, %v894, 0
        %v1002 = vsel %vm991, %v896, 0
        %v1005 = vsel %vm991, %v898, 0
        %v1008 = vsel %vm991, %v900, 0
        %1010 = vmatpush.msra.mxu0 %v931
        %1011 = vmatpush.msra.mxu0 %v929
        %1012 = vmatpush.msra.mxu0 %v927
        %1013 = vmatpush.msra.mxu0 %v925
        %1014 = vmatpush.msra.mxu0 %v923
        %1015 = vmatpush.msra.mxu0 %v921
        %1016 = vmatpush.msra.mxu0 %v919
        %1017 = vmatpush.msra.mxu0 %v917
        %1018 = vmatpush.msra.mxu0 %v915
        %1019 = vmatpush.msra.mxu0 %v913
        %1020 = vmatpush.msra.mxu0 %v911
        %1021 = vmatpush.msra.mxu0 %v909
        %1022 = vmatpush.msra.mxu0 %v907
        %1023 = vmatpush.msra.mxu0 %v905
        %1024 = vmatpush.msra.mxu0 %v903
        %1025 = vmatpush.msra.mxu0 %v901
        %1026 = vmatmul.f32.gmra.mxu0 %v889
        %v1027 = vpop.f32.mrf.mxu0
        %v1028 = vadd.f32 %v964, %v1027
        %1029 = vmatmul.f32.gmra.mxu0 %v891
        %v1030 = vpop.f32.mrf.mxu0
        %v1031 = vadd.f32 %v969, %v1030
        %1032 = vmatmul.f32.gmra.mxu0 %v893
        %v1033 = vpop.f32.mrf.mxu0
        %v1034 = vadd.f32 %v974, %v1033
        %1035 = vmatmul.f32.gmra.mxu0 %v895
        %v1036 = vpop.f32.mrf.mxu0
        %v1037 = vadd.f32 %v979, %v1036
        %1038 = vmatmul.f32.gmra.mxu0 %v897
        %v1039 = vpop.f32.mrf.mxu0
        %v1040 = vadd.f32 %v984, %v1039
        %1041 = vmatmul.f32.gmra.mxu0 %v899
        %v1042 = vpop.f32.mrf.mxu0
        %v1043 = vadd.f32 %v989, %v1042
        %1044 = vdwg.mxu0
        %1045 = vmatpush.msra.mxu0 0.0
        %1046 = vmatpush.msra.mxu0 0.0
        %1047 = vmatpush.msra.mxu0 0.0
        %1048 = vmatpush.msra.mxu0 0.0
        %1049 = vmatpush.msra.mxu0 0.0
        %1050 = vmatpush.msra.mxu0 %v953
        %1051 = vmatpush.msra.mxu0 %v951
        %1052 = vmatpush.msra.mxu0 %v949
        %1053 = vmatpush.msra.mxu0 %v947
        %1054 = vmatpush.msra.mxu0 %v945
        %1055 = vmatpush.msra.mxu0 %v943
        %1056 = vmatpush.msra.mxu0 %v941
        %1057 = vmatpush.msra.mxu0 %v939
        %1058 = vmatpush.msra.mxu0 %v937
        %1059 = vmatpush.msra.mxu0 %v935
        %1060 = vmatpush.msra.mxu0 %v933
        %1061 = vmatmul.f32.gmra.mxu0 %v993
        %v1062 = vpop.f32.mrf.mxu0
        %v1063 = vadd.f32 %v1028, %v1062
        %1064 = vmatmul.f32.gmra.mxu0 %v996
        %v1065 = vpop.f32.mrf.mxu0
        %v1066 = vadd.f32 %v1031, %v1065
        %1067 = vmatmul.f32.gmra.mxu0 %v999
        %v1068 = vpop.f32.mrf.mxu0
        %v1069 = vadd.f32 %v1034, %v1068
        %1070 = vmatmul.f32.gmra.mxu0 %v1002
        %v1071 = vpop.f32.mrf.mxu0
        %v1072 = vadd.f32 %v1037, %v1071
        %1073 = vmatmul.f32.gmra.mxu0 %v1005
        %v1074 = vpop.f32.mrf.mxu0
        %v1075 = vadd.f32 %v1040, %v1074
        %1076 = vmatmul.f32.gmra.mxu0 %v1008
        %v1077 = vpop.f32.mrf.mxu0
        %v1078 = vadd.f32 %v1043, %v1077
        %1079 = vdwg.mxu0
        %1080 = vmatpush.msra.mxu0 %v932
        %1081 = vmatpush.msra.mxu0 %v930
        %1082 = vmatpush.msra.mxu0 %v928
        %1083 = vmatpush.msra.mxu0 %v926
        %1084 = vmatpush.msra.mxu0 %v924
        %1085 = vmatpush.msra.mxu0 %v922
        %1086 = vmatpush.msra.mxu0 %v920
        %1087 = vmatpush.msra.mxu0 %v918
        %1088 = vmatpush.msra.mxu0 %v916
        %1089 = vmatpush.msra.mxu0 %v914
        %1090 = vmatpush.msra.mxu0 %v912
        %1091 = vmatpush.msra.mxu0 %v910
        %1092 = vmatpush.msra.mxu0 %v908
        %1093 = vmatpush.msra.mxu0 %v906
        %1094 = vmatpush.msra.mxu0 %v904
        %1095 = vmatpush.msra.mxu0 %v902
        %1096 = vmatmul.f32.gmra.mxu0 %v889
        %v1097 = vpop.f32.mrf.mxu0
        %v1098 = vadd.f32 %v964, %v1097
        %1099 = vmatmul.f32.gmra.mxu0 %v891
        %v1100 = vpop.f32.mrf.mxu0
        %v1101 = vadd.f32 %v969, %v1100
        %1102 = vmatmul.f32.gmra.mxu0 %v893
        %v1103 = vpop.f32.mrf.mxu0
        %v1104 = vadd.f32 %v974, %v1103
        %1105 = vmatmul.f32.gmra.mxu0 %v895
        %v1106 = vpop.f32.mrf.mxu0
        %v1107 = vadd.f32 %v979, %v1106
        %1108 = vmatmul.f32.gmra.mxu0 %v897
        %v1109 = vpop.f32.mrf.mxu0
        %v1110 = vadd.f32 %v984, %v1109
        %1111 = vmatmul.f32.gmra.mxu0 %v899
        %v1112 = vpop.f32.mrf.mxu0
        %v1113 = vadd.f32 %v989, %v1112
        %1114 = vdwg.mxu0
        %1115 = vmatpush.msra.mxu0 0.0
        %1116 = vmatpush.msra.mxu0 0.0
        %1117 = vmatpush.msra.mxu0 0.0
        %1118 = vmatpush.msra.mxu0 0.0
        %1119 = vmatpush.msra.mxu0 0.0
        %1120 = vmatpush.msra.mxu0 %v954
        %1121 = vmatpush.msra.mxu0 %v952
        %1122 = vmatpush.msra.mxu0 %v950
        %1123 = vmatpush.msra.mxu0 %v948
        %1124 = vmatpush.msra.mxu0 %v946
        %1125 = vmatpush.msra.mxu0 %v944
        %1126 = vmatpush.msra.mxu0 %v942
        %1127 = vmatpush.msra.mxu0 %v940
        %1128 = vmatpush.msra.mxu0 %v938
        %1129 = vmatpush.msra.mxu0 %v936
        %1130 = vmatpush.msra.mxu0 %v934
        %1131 = vmatmul.f32.gmra.mxu0 %v993
        %v1132 = vpop.f32.mrf.mxu0
        %v1133 = vadd.f32 %v1098, %v1132
        %1134 = vmatmul.f32.gmra.mxu0 %v996
        %v1135 = vpop.f32.mrf.mxu0
        %v1136 = vadd.f32 %v1101, %v1135
        %1137 = vmatmul.f32.gmra.mxu0 %v999
        %v1138 = vpop.f32.mrf.mxu0
        %v1139 = vadd.f32 %v1104, %v1138
        %1140 = vmatmul.f32.gmra.mxu0 %v1002
        %v1141 = vpop.f32.mrf.mxu0
        %v1142 = vadd.f32 %v1107, %v1141
        %1143 = vmatmul.f32.gmra.mxu0 %v1005
        %v1144 = vpop.f32.mrf.mxu0
        %v1145 = vadd.f32 %v1110, %v1144
        %1146 = vmatmul.f32.gmra.mxu0 %v1008
        %v1147 = vpop.f32.mrf.mxu0
        %v1148 = vadd.f32 %v1113, %v1147
        %1149 = vdwg.mxu0
        %1150 = vst [vmem:[#allocation3] sm:$0xff] %v1072
        %1151 = vst [vmem:[#allocation3 + $0x8] sm:$0xff] %v1142
        %1152 = vst [vmem:[#allocation3 + $0x10] sm:$0xff] %v1075
        %1153 = vst [vmem:[#allocation3 + $0x18] sm:$0xff] %v1145
        %1154 = vst [vmem:[#allocation3 + $0x20] sm:$0xff] %v1078
        %1155 = vst [vmem:[#allocation3 + $0x28] sm:$0xff] %v1148
        %v1156 = vmax.f32 %v1063, 0.0
        %v1157 = vmax.f32 %v1133, 0.0
        %v1158 = vmax.f32 %v1066, 0.0
        %v1159 = vmax.f32 %v1136, 0.0
        %v1160 = vmax.f32 %v1069, 0.0
        %v1161 = vmax.f32 %v1139, 0.0
        %1162 = vst [vmem:[#allocation2 + $0xc0] sm:$0xff] %v1156
        %1163 = vst [vmem:[#allocation2 + $0xc8] sm:$0xff] %v1157
        %1164 = vst [vmem:[#allocation2 + $0xd0] sm:$0xff] %v1158
        %1165 = vst [vmem:[#allocation2 + $0xd8] sm:$0xff] %v1159
        %1166 = vst [vmem:[#allocation2 + $0xe0] sm:$0xff] %v1160
        %1167 = vst [vmem:[#allocation2 + $0xe8] sm:$0xff] %v1161
        %v1168 = vld [vmem:[#allocation2 + $0xc0] sm:$0xff]
        %v1169 = vld [vmem:[#allocation2 + $0xc8] sm:$0xff]
        %v1170 = vld [vmem:[#allocation2 + $0xd0] sm:$0xff]
        %v1171 = vld [vmem:[#allocation2 + $0xd8] sm:$0xff]
        %v1172 = vld [vmem:[#allocation2 + $0xe0] sm:$0xff]
        %v1173 = vld [vmem:[#allocation2 + $0xe8] sm:$0xff]
        %1174 = vrot.lane.b32.xlu0 %v1168, 17
        %v1175 = vpop.permute.xlu0 %1174
        %1176 = vrot.lane.b32.xlu0 %v1170, 17
        %v1177 = vpop.permute.xlu0 %1176
        %1178 = vrot.lane.b32.xlu0 %v1172, 17
        %v1179 = vpop.permute.xlu0 %1178
        %1180 = vrot.lane.b32.xlu0 %v1169, 17
        %v1181 = vpop.permute.xlu0 %1180
        %1182 = vrot.lane.b32.xlu0 %v1171, 17
        %v1183 = vpop.permute.xlu0 %1182
        %1184 = vrot.lane.b32.xlu0 %v1173, 17
        %v1185 = vpop.permute.xlu0 %1184
        %v1186 = vsel %vm556, %v1175, %v1181
        %v1187 = vsel %vm556, %v1177, %v1183
        %v1188 = vsel %vm556, %v1179, %v1185
        %v1189 = vsel %vm556, %v1181, %v1175
        %v1190 = vsel %vm556, %v1183, %v1177
        %v1191 = vsel %vm556, %v1185, %v1179
        %v1192 = vld [vmem:[%s11] ss:$8 sm:$0x3]
        %v1194 = vperm.slane %v1192, 0
        %v1195 = vperm.slane %v1192, 1
        %v1198 = vmul.f32 %v1189, %v1194
        %v1199 = vmul.f32 %v1186, %v1195
        %v1200 = vmul.f32 %v1190, %v1194
        %v1201 = vmul.f32 %v1187, %v1195
        %v1202 = vmul.f32 %v1191, %v1194
        %v1203 = vmul.f32 %v1188, %v1195
        %1204 = vst [vmem:[#allocation2] sm:$0xff] %v1198
        %1205 = vst [vmem:[#allocation2 + $0x8] sm:$0xff] %v1199
        %1206 = vst [vmem:[#allocation2 + $0x10] sm:$0xff] %v1200
        %1207 = vst [vmem:[#allocation2 + $0x18] sm:$0xff] %v1201
        %1208 = vst [vmem:[#allocation2 + $0x20] sm:$0xff] %v1202
        %1209 = vst [vmem:[#allocation2 + $0x28] sm:$0xff] %v1203
        %v1210 = vld [vmem:[#allocation2 + $0xc0] sm:$0xff]
        %v1211 = vld [vmem:[#allocation2 + $0xc8] sm:$0xff]
        %v1212 = vld [vmem:[#allocation2 + $0xd0] sm:$0xff]
        %v1213 = vld [vmem:[#allocation2 + $0xd8] sm:$0xff]
        %v1214 = vld [vmem:[#allocation2 + $0xe0] sm:$0xff]
        %v1215 = vld [vmem:[#allocation2 + $0xe8] sm:$0xff]
        %1216 = vrot.lane.b32.xlu0 %v1210, 16
        %v1217 = vpop.permute.xlu0 %1216
        %1218 = vrot.lane.b32.xlu0 %v1212, 16
        %v1219 = vpop.permute.xlu0 %1218
        %1220 = vrot.lane.b32.xlu0 %v1214, 16
        %v1221 = vpop.permute.xlu0 %1220
        %1222 = vrot.lane.b32.xlu0 %v1211, 16
        %v1223 = vpop.permute.xlu0 %1222
        %1224 = vrot.lane.b32.xlu0 %v1213, 16
        %v1225 = vpop.permute.xlu0 %1224
        %1226 = vrot.lane.b32.xlu0 %v1215, 16
        %v1227 = vpop.permute.xlu0 %1226
        %v1228 = vsel %vm599, %v1217, %v1223
        %v1229 = vsel %vm599, %v1219, %v1225
        %v1230 = vsel %vm599, %v1221, %v1227
        %v1231 = vsel %vm599, %v1223, %v1217
        %v1232 = vsel %vm599, %v1225, %v1219
        %v1233 = vsel %vm599, %v1227, %v1221
        %v1234 = vld [vmem:[%s606] ss:$8 sm:$0x3]
        %v1236 = vperm.slane %v1234, 0
        %v1237 = vperm.slane %v1234, 1
        %v1240 = vmul.f32 %v1231, %v1236
        %v1241 = vmul.f32 %v1228, %v1237
        %v1242 = vmul.f32 %v1232, %v1236
        %v1243 = vmul.f32 %v1229, %v1237
        %v1244 = vmul.f32 %v1233, %v1236
        %v1245 = vmul.f32 %v1230, %v1237
        %1246 = vst [vmem:[#allocation2 + $0x30] sm:$0xff] %v1240
        %1247 = vst [vmem:[#allocation2 + $0x38] sm:$0xff] %v1241
        %1248 = vst [vmem:[#allocation2 + $0x40] sm:$0xff] %v1242
        %1249 = vst [vmem:[#allocation2 + $0x48] sm:$0xff] %v1243
        %1250 = vst [vmem:[#allocation2 + $0x50] sm:$0xff] %v1244
        %1251 = vst [vmem:[#allocation2 + $0x58] sm:$0xff] %v1245
        %v1252 = vld [vmem:[#allocation2 + $0xc0] sm:$0xff]
        %v1253 = vld [vmem:[#allocation2 + $0xc8] sm:$0xff]
        %v1254 = vld [vmem:[#allocation2 + $0xd0] sm:$0xff]
        %v1255 = vld [vmem:[#allocation2 + $0xd8] sm:$0xff]
        %v1256 = vld [vmem:[#allocation2 + $0xe0] sm:$0xff]
        %v1257 = vld [vmem:[#allocation2 + $0xe8] sm:$0xff]
        %1258 = vrot.lane.b32.xlu0 %v1252, 15
        %v1259 = vpop.permute.xlu0 %1258
        %1260 = vrot.lane.b32.xlu0 %v1254, 15
        %v1261 = vpop.permute.xlu0 %1260
        %1262 = vrot.lane.b32.xlu0 %v1256, 15
        %v1263 = vpop.permute.xlu0 %1262
        %1264 = vrot.lane.b32.xlu0 %v1253, 15
        %v1265 = vpop.permute.xlu0 %1264
        %1266 = vrot.lane.b32.xlu0 %v1255, 15
        %v1267 = vpop.permute.xlu0 %1266
        %1268 = vrot.lane.b32.xlu0 %v1257, 15
        %v1269 = vpop.permute.xlu0 %1268
        %v1270 = vsel %vm643, %v1259, %v1265
        %v1271 = vsel %vm643, %v1261, %v1267
        %v1272 = vsel %vm643, %v1263, %v1269
        %v1273 = vsel %vm643, %v1265, %v1259
        %v1274 = vsel %vm643, %v1267, %v1261
        %v1275 = vsel %vm643, %v1269, %v1263
        %v1276 = vld [vmem:[%s650] ss:$8 sm:$0x3]
        %v1278 = vperm.slane %v1276, 0
        %v1279 = vperm.slane %v1276, 1
        %v1282 = vmul.f32 %v1273, %v1278
        %v1283 = vmul.f32 %v1270, %v1279
        %v1284 = vmul.f32 %v1274, %v1278
        %v1285 = vmul.f32 %v1271, %v1279
        %v1286 = vmul.f32 %v1275, %v1278
        %v1287 = vmul.f32 %v1272, %v1279
        %1288 = vst [vmem:[#allocation2 + $0x60] sm:$0xff] %v1282
        %1289 = vst [vmem:[#allocation2 + $0x68] sm:$0xff] %v1283
        %1290 = vst [vmem:[#allocation2 + $0x70] sm:$0xff] %v1284
        %1291 = vst [vmem:[#allocation2 + $0x78] sm:$0xff] %v1285
        %1292 = vst [vmem:[#allocation2 + $0x80] sm:$0xff] %v1286
        %1293 = vst [vmem:[#allocation2 + $0x88] sm:$0xff] %v1287
        %v1294 = vld [vmem:[#allocation2 + $0xc0] sm:$0xff]
        %v1295 = vld [vmem:[#allocation2 + $0xc8] sm:$0xff]
        %v1296 = vld [vmem:[#allocation2 + $0xd0] sm:$0xff]
        %v1297 = vld [vmem:[#allocation2 + $0xd8] sm:$0xff]
        %v1298 = vld [vmem:[#allocation2 + $0xe0] sm:$0xff]
        %v1299 = vld [vmem:[#allocation2 + $0xe8] sm:$0xff]
        %1300 = vrot.lane.b32.xlu0 %v1294, 1
        %v1301 = vpop.permute.xlu0 %1300
        %1302 = vrot.lane.b32.xlu0 %v1296, 1
        %v1303 = vpop.permute.xlu0 %1302
        %1304 = vrot.lane.b32.xlu0 %v1298, 1
        %v1305 = vpop.permute.xlu0 %1304
        %1306 = vrot.lane.b32.xlu0 %v1295, 1
        %v1307 = vpop.permute.xlu0 %1306
        %1308 = vrot.lane.b32.xlu0 %v1297, 1
        %v1309 = vpop.permute.xlu0 %1308
        %1310 = vrot.lane.b32.xlu0 %v1299, 1
        %v1311 = vpop.permute.xlu0 %1310
        %v1312 = vsel %vm687, %v1301, %v1307
        %v1313 = vsel %vm687, %v1303, %v1309
        %v1314 = vsel %vm687, %v1305, %v1311
        %v1315 = vsel %vm687, %v1307, %v1301
        %v1316 = vsel %vm687, %v1309, %v1303
        %v1317 = vsel %vm687, %v1311, %v1305
        %v1318 = vld [vmem:[%s694] ss:$8 sm:$0x3]
        %v1320 = vperm.slane %v1318, 0
        %v1321 = vperm.slane %v1318, 1
        %v1324 = vmul.f32 %v1315, %v1320
        %v1325 = vmul.f32 %v1312, %v1321
        %v1326 = vmul.f32 %v1316, %v1320
        %v1327 = vmul.f32 %v1313, %v1321
        %v1328 = vmul.f32 %v1317, %v1320
        %v1329 = vmul.f32 %v1314, %v1321
        %1330 = vst [vmem:[#allocation2 + $0x90] sm:$0xff] %v1324
        %1331 = vst [vmem:[#allocation2 + $0x98] sm:$0xff] %v1325
        %1332 = vst [vmem:[#allocation2 + $0xa0] sm:$0xff] %v1326
        %1333 = vst [vmem:[#allocation2 + $0xa8] sm:$0xff] %v1327
        %1334 = vst [vmem:[#allocation2 + $0xb0] sm:$0xff] %v1328
        %1335 = vst [vmem:[#allocation2 + $0xb8] sm:$0xff] %v1329
        %v1336 = vld [vmem:[#allocation2 + $0xc0] sm:$0xff]
        %v1337 = vld [vmem:[#allocation2 + $0xc8] sm:$0xff]
        %v1338 = vld [vmem:[#allocation2 + $0xd0] sm:$0xff]
        %v1339 = vld [vmem:[#allocation2 + $0xd8] sm:$0xff]
        %v1340 = vld [vmem:[#allocation2 + $0xe0] sm:$0xff]
        %v1341 = vld [vmem:[#allocation2 + $0xe8] sm:$0xff]
        %1342 = vrot.lane.b32.xlu0 %v1336, 127
        %v1343 = vpop.permute.xlu0 %1342
        %1344 = vrot.lane.b32.xlu0 %v1338, 127
        %v1345 = vpop.permute.xlu0 %1344
        %1346 = vrot.lane.b32.xlu0 %v1340, 127
        %v1347 = vpop.permute.xlu0 %1346
        %1348 = vrot.lane.b32.xlu0 %v1337, 127
        %v1349 = vpop.permute.xlu0 %1348
        %1350 = vrot.lane.b32.xlu0 %v1339, 127
        %v1351 = vpop.permute.xlu0 %1350
        %1352 = vrot.lane.b32.xlu0 %v1341, 127
        %v1353 = vpop.permute.xlu0 %1352
        %v1354 = vsel %vm731, %v1343, %v1349
        %v1355 = vsel %vm731, %v1345, %v1351
        %v1356 = vsel %vm731, %v1347, %v1353
        %v1357 = vsel %vm731, %v1349, %v1343
        %v1358 = vsel %vm731, %v1351, %v1345
        %v1359 = vsel %vm731, %v1353, %v1347
        %v1360 = vld [vmem:[%s738] ss:$8 sm:$0x3]
        %v1362 = vperm.slane %v1360, 0
        %v1363 = vperm.slane %v1360, 1
        %v1366 = vmul.f32 %v1354, %v1362
        %v1367 = vmul.f32 %v1357, %v1363
        %v1368 = vmul.f32 %v1355, %v1362
        %v1369 = vmul.f32 %v1358, %v1363
        %v1370 = vmul.f32 %v1356, %v1362
        %v1371 = vmul.f32 %v1359, %v1363
        %1372 = vst [vmem:[#allocation2 + $0xf0] sm:$0xff] %v1366
        %1373 = vst [vmem:[#allocation2 + $0xf8] sm:$0xff] %v1367
        %1374 = vst [vmem:[#allocation2 + $0x100] sm:$0xff] %v1368
        %1375 = vst [vmem:[#allocation2 + $0x108] sm:$0xff] %v1369
        %1376 = vst [vmem:[#allocation2 + $0x110] sm:$0xff] %v1370
        %1377 = vst [vmem:[#allocation2 + $0x118] sm:$0xff] %v1371
        %v1378 = vld [vmem:[#allocation2 + $0xc0] sm:$0xff]
        %v1379 = vld [vmem:[#allocation2 + $0xc8] sm:$0xff]
        %v1380 = vld [vmem:[#allocation2 + $0xd0] sm:$0xff]
        %v1381 = vld [vmem:[#allocation2 + $0xd8] sm:$0xff]
        %v1382 = vld [vmem:[#allocation2 + $0xe0] sm:$0xff]
        %v1383 = vld [vmem:[#allocation2 + $0xe8] sm:$0xff]
        %1384 = vrot.lane.b32.xlu0 %v1378, 113
        %v1385 = vpop.permute.xlu0 %1384
        %1386 = vrot.lane.b32.xlu0 %v1380, 113
        %v1387 = vpop.permute.xlu0 %1386
        %1388 = vrot.lane.b32.xlu0 %v1382, 113
        %v1389 = vpop.permute.xlu0 %1388
        %1390 = vrot.lane.b32.xlu0 %v1379, 113
        %v1391 = vpop.permute.xlu0 %1390
        %1392 = vrot.lane.b32.xlu0 %v1381, 113
        %v1393 = vpop.permute.xlu0 %1392
        %1394 = vrot.lane.b32.xlu0 %v1383, 113
        %v1395 = vpop.permute.xlu0 %1394
        %v1396 = vsel %vm775, %v1385, %v1391
        %v1397 = vsel %vm775, %v1387, %v1393
        %v1398 = vsel %vm775, %v1389, %v1395
        %v1399 = vsel %vm775, %v1391, %v1385
        %v1400 = vsel %vm775, %v1393, %v1387
        %v1401 = vsel %vm775, %v1395, %v1389
        %v1402 = vld [vmem:[%s782] ss:$8 sm:$0x3]
        %v1404 = vperm.slane %v1402, 0
        %v1405 = vperm.slane %v1402, 1
        %v1408 = vmul.f32 %v1396, %v1404
        %v1409 = vmul.f32 %v1399, %v1405
        %v1410 = vmul.f32 %v1397, %v1404
        %v1411 = vmul.f32 %v1400, %v1405
        %v1412 = vmul.f32 %v1398, %v1404
        %v1413 = vmul.f32 %v1401, %v1405
        %1414 = vst [vmem:[#allocation2 + $0x120] sm:$0xff] %v1408
        %1415 = vst [vmem:[#allocation2 + $0x128] sm:$0xff] %v1409
        %1416 = vst [vmem:[#allocation2 + $0x130] sm:$0xff] %v1410
        %1417 = vst [vmem:[#allocation2 + $0x138] sm:$0xff] %v1411
        %1418 = vst [vmem:[#allocation2 + $0x140] sm:$0xff] %v1412
        %1419 = vst [vmem:[#allocation2 + $0x148] sm:$0xff] %v1413
        %v1420 = vld [vmem:[#allocation2 + $0xc0] sm:$0xff]
        %v1421 = vld [vmem:[#allocation2 + $0xc8] sm:$0xff]
        %v1422 = vld [vmem:[#allocation2 + $0xd0] sm:$0xff]
        %v1423 = vld [vmem:[#allocation2 + $0xd8] sm:$0xff]
        %v1424 = vld [vmem:[#allocation2 + $0xe0] sm:$0xff]
        %v1425 = vld [vmem:[#allocation2 + $0xe8] sm:$0xff]
        %1426 = vrot.lane.b32.xlu0 %v1420, 112
        %v1427 = vpop.permute.xlu0 %1426
        %1428 = vrot.lane.b32.xlu0 %v1422, 112
        %v1429 = vpop.permute.xlu0 %1428
        %1430 = vrot.lane.b32.xlu0 %v1424, 112
        %v1431 = vpop.permute.xlu0 %1430
        %1432 = vrot.lane.b32.xlu0 %v1421, 112
        %v1433 = vpop.permute.xlu0 %1432
        %1434 = vrot.lane.b32.xlu0 %v1423, 112
        %v1435 = vpop.permute.xlu0 %1434
        %1436 = vrot.lane.b32.xlu0 %v1425, 112
        %v1437 = vpop.permute.xlu0 %1436
        %v1438 = vsel %vm819, %v1427, %v1433
        %v1439 = vsel %vm819, %v1429, %v1435
        %v1440 = vsel %vm819, %v1431, %v1437
        %v1441 = vsel %vm819, %v1433, %v1427
        %v1442 = vsel %vm819, %v1435, %v1429
        %v1443 = vsel %vm819, %v1437, %v1431
        %v1444 = vld [vmem:[%s826] ss:$8 sm:$0x3]
        %v1446 = vperm.slane %v1444, 0
        %v1447 = vperm.slane %v1444, 1
        %v1450 = vmul.f32 %v1438, %v1446
        %v1451 = vmul.f32 %v1441, %v1447
        %v1452 = vmul.f32 %v1439, %v1446
        %v1453 = vmul.f32 %v1442, %v1447
        %v1454 = vmul.f32 %v1440, %v1446
        %v1455 = vmul.f32 %v1443, %v1447
        %1456 = vst [vmem:[#allocation2 + $0x150] sm:$0xff] %v1450
        %1457 = vst [vmem:[#allocation2 + $0x158] sm:$0xff] %v1451
        %1458 = vst [vmem:[#allocation2 + $0x160] sm:$0xff] %v1452
        %1459 = vst [vmem:[#allocation2 + $0x168] sm:$0xff] %v1453
        %1460 = vst [vmem:[#allocation2 + $0x170] sm:$0xff] %v1454
        %1461 = vst [vmem:[#allocation2 + $0x178] sm:$0xff] %v1455
        %v1462 = vld [vmem:[#allocation2 + $0xc0] sm:$0xff]
        %v1463 = vld [vmem:[#allocation2 + $0xc8] sm:$0xff]
        %v1464 = vld [vmem:[#allocation2 + $0xd0] sm:$0xff]
        %v1465 = vld [vmem:[#allocation2 + $0xd8] sm:$0xff]
        %v1466 = vld [vmem:[#allocation2 + $0xe0] sm:$0xff]
        %v1467 = vld [vmem:[#allocation2 + $0xe8] sm:$0xff]
        %1468 = vrot.lane.b32.xlu0 %v1462, 111
        %v1469 = vpop.permute.xlu0 %1468
        %1470 = vrot.lane.b32.xlu0 %v1464, 111
        %v1471 = vpop.permute.xlu0 %1470
        %1472 = vrot.lane.b32.xlu0 %v1466, 111
        %v1473 = vpop.permute.xlu0 %1472
        %1474 = vrot.lane.b32.xlu0 %v1463, 111
        %v1475 = vpop.permute.xlu0 %1474
        %1476 = vrot.lane.b32.xlu0 %v1465, 111
        %v1477 = vpop.permute.xlu0 %1476
        %1478 = vrot.lane.b32.xlu0 %v1467, 111
        %v1479 = vpop.permute.xlu0 %1478
        %v1480 = vsel %vm863, %v1469, %v1475
        %v1481 = vsel %vm863, %v1471, %v1477
        %v1482 = vsel %vm863, %v1473, %v1479
        %v1483 = vsel %vm863, %v1475, %v1469
        %v1484 = vsel %vm863, %v1477, %v1471
        %v1485 = vsel %vm863, %v1479, %v1473
        %v1486 = vld [vmem:[%s870] ss:$8 sm:$0x3]
        %v1488 = vperm.slane %v1486, 0
        %v1489 = vperm.slane %v1486, 1
        %v1492 = vmul.f32 %v1480, %v1488
        %v1493 = vmul.f32 %v1483, %v1489
        %v1494 = vmul.f32 %v1481, %v1488
        %v1495 = vmul.f32 %v1484, %v1489
        %v1496 = vmul.f32 %v1482, %v1488
        %v1497 = vmul.f32 %v1485, %v1489
        %1498 = vst [vmem:[#allocation2 + $0x180] sm:$0xff] %v1492
        %1499 = vst [vmem:[#allocation2 + $0x188] sm:$0xff] %v1493
        %1500 = vst [vmem:[#allocation2 + $0x190] sm:$0xff] %v1494
        %1501 = vst [vmem:[#allocation2 + $0x198] sm:$0xff] %v1495
        %1502 = vst [vmem:[#allocation2 + $0x1a0] sm:$0xff] %v1496
        %1503 = vst [vmem:[#allocation2 + $0x1a8] sm:$0xff] %v1497
        %v1504 = vld [vmem:[%s5] sm:$0xff]
        %v1505 = vld [vmem:[%s5 + $0x8] sm:$0xff]
        %v1506 = vld [vmem:[%s5 + $0x10] sm:$0xff]
        %v1507 = vld [vmem:[%s5 + $0x18] sm:$0xff]
        %v1508 = vld [vmem:[%s5 + $0x20] sm:$0xff]
        %v1509 = vld [vmem:[%s5 + $0x28] sm:$0xff]
        %v1510 = vld [vmem:[#allocation2] sm:$0xff]
        %v1511 = vld [vmem:[#allocation2 + $0x8] sm:$0xff]
        %v1512 = vld [vmem:[#allocation2 + $0x10] sm:$0xff]
        %v1513 = vld [vmem:[#allocation2 + $0x18] sm:$0xff]
        %v1514 = vld [vmem:[#allocation2 + $0x20] sm:$0xff]
        %v1515 = vld [vmem:[#allocation2 + $0x28] sm:$0xff]
        %v1516 = vld [vmem:[#allocation2 + $0x30] sm:$0xff]
        %v1517 = vld [vmem:[#allocation2 + $0x38] sm:$0xff]
        %v1518 = vld [vmem:[#allocation2 + $0x40] sm:$0xff]
        %v1519 = vld [vmem:[#allocation2 + $0x48] sm:$0xff]
        %v1520 = vld [vmem:[#allocation2 + $0x50] sm:$0xff]
        %v1521 = vld [vmem:[#allocation2 + $0x58] sm:$0xff]
        %v1522 = vld [vmem:[#allocation2 + $0x60] sm:$0xff]
        %v1523 = vld [vmem:[#allocation2 + $0x68] sm:$0xff]
        %v1524 = vld [vmem:[#allocation2 + $0x70] sm:$0xff]
        %v1525 = vld [vmem:[#allocation2 + $0x78] sm:$0xff]
        %v1526 = vld [vmem:[#allocation2 + $0x80] sm:$0xff]
        %v1527 = vld [vmem:[#allocation2 + $0x88] sm:$0xff]
        %v1528 = vld [vmem:[#allocation2 + $0x90] sm:$0xff]
        %v1529 = vld [vmem:[#allocation2 + $0x98] sm:$0xff]
        %v1530 = vld [vmem:[#allocation2 + $0xa0] sm:$0xff]
        %v1531 = vld [vmem:[#allocation2 + $0xa8] sm:$0xff]
        %v1532 = vld [vmem:[#allocation2 + $0xb0] sm:$0xff]
        %v1533 = vld [vmem:[#allocation2 + $0xb8] sm:$0xff]
        %v1534 = vld [vmem:[#allocation2 + $0xc0] sm:$0xff]
        %v1535 = vld [vmem:[#allocation2 + $0xc8] sm:$0xff]
        %v1536 = vld [vmem:[#allocation2 + $0xd0] sm:$0xff]
        %v1537 = vld [vmem:[#allocation2 + $0xd8] sm:$0xff]
        %v1538 = vld [vmem:[#allocation2 + $0xe0] sm:$0xff]
        %v1539 = vld [vmem:[#allocation2 + $0xe8] sm:$0xff]
        %v1540 = vld [vmem:[#allocation2 + $0xf0] sm:$0xff]
        %v1541 = vld [vmem:[#allocation2 + $0xf8] sm:$0xff]
        %v1542 = vld [vmem:[#allocation2 + $0x100] sm:$0xff]
        %v1543 = vld [vmem:[#allocation2 + $0x108] sm:$0xff]
        %v1544 = vld [vmem:[#allocation2 + $0x110] sm:$0xff]
        %v1545 = vld [vmem:[#allocation2 + $0x118] sm:$0xff]
        %v1546 = vld [vmem:[#allocation2 + $0x120] sm:$0xff]
        %v1547 = vld [vmem:[#allocation2 + $0x128] sm:$0xff]
        %v1548 = vld [vmem:[#allocation2 + $0x130] sm:$0xff]
        %v1549 = vld [vmem:[#allocation2 + $0x138] sm:$0xff]
        %v1550 = vld [vmem:[#allocation2 + $0x140] sm:$0xff]
        %v1551 = vld [vmem:[#allocation2 + $0x148] sm:$0xff]
        %v1552 = vld [vmem:[#allocation2 + $0x150] sm:$0xff]
        %v1553 = vld [vmem:[#allocation2 + $0x158] sm:$0xff]
        %v1554 = vld [vmem:[#allocation2 + $0x160] sm:$0xff]
        %v1555 = vld [vmem:[#allocation2 + $0x168] sm:$0xff]
        %v1556 = vld [vmem:[#allocation2 + $0x170] sm:$0xff]
        %v1557 = vld [vmem:[#allocation2 + $0x178] sm:$0xff]
        %v1558 = vld [vmem:[#allocation2 + $0x180] sm:$0xff]
        %v1559 = vld [vmem:[#allocation2 + $0x188] sm:$0xff]
        %v1560 = vld [vmem:[#allocation2 + $0x190] sm:$0xff]
        %v1561 = vld [vmem:[#allocation2 + $0x198] sm:$0xff]
        %v1562 = vld [vmem:[#allocation2 + $0x1a0] sm:$0xff]
        %v1563 = vld [vmem:[#allocation2 + $0x1a8] sm:$0xff]
        %v1564 = vld [vmem:[%s6] sm:$0xff]
        %v1565 = vld [vmem:[%s6 + $0x8] sm:$0xff]
        %v1566 = vld [vmem:[%s6 + $0x10] sm:$0xff]
        %1568 = vset.pattern.permute.xlu0 0
        %1569 = vperm.xlu0 %1568, %v1564
        %v1570 = vpop.permute.xlu0 %1569
        %1573 = vset.pattern.permute.xlu0 0
        %1574 = vperm.xlu0 %1573, %v1565
        %v1575 = vpop.permute.xlu0 %1574
        %1578 = vset.pattern.permute.xlu0 0
        %1579 = vperm.xlu0 %1578, %v1566
        %v1580 = vpop.permute.xlu0 %1579
        %v1583 = vsel %vm991, %v1505, 0
        %v1586 = vsel %vm991, %v1507, 0
        %v1589 = vsel %vm991, %v1509, 0
        %1591 = vmatpush.msra.mxu0 %v1540
        %1592 = vmatpush.msra.mxu0 %v1538
        %1593 = vmatpush.msra.mxu0 %v1536
        %1594 = vmatpush.msra.mxu0 %v1534
        %1595 = vmatpush.msra.mxu0 %v1532
        %1596 = vmatpush.msra.mxu0 %v1530
        %1597 = vmatpush.msra.mxu0 %v1528
        %1598 = vmatpush.msra.mxu0 %v1526
        %1599 = vmatpush.msra.mxu0 %v1524
        %1600 = vmatpush.msra.mxu0 %v1522
        %1601 = vmatpush.msra.mxu0 %v1520
        %1602 = vmatpush.msra.mxu0 %v1518
        %1603 = vmatpush.msra.mxu0 %v1516
        %1604 = vmatpush.msra.mxu0 %v1514
        %1605 = vmatpush.msra.mxu0 %v1512
        %1606 = vmatpush.msra.mxu0 %v1510
        %1607 = vmatmul.f32.gmra.mxu0 %v1504
        %v1608 = vpop.f32.mrf.mxu0
        %v1609 = vadd.f32 %v1570, %v1608
        %1610 = vmatmul.f32.gmra.mxu0 %v1506
        %v1611 = vpop.f32.mrf.mxu0
        %v1612 = vadd.f32 %v1575, %v1611
        %1613 = vmatmul.f32.gmra.mxu0 %v1508
        %v1614 = vpop.f32.mrf.mxu0
        %v1615 = vadd.f32 %v1580, %v1614
        %1616 = vdwg.mxu0
        %1617 = vmatpush.msra.mxu0 0.0
        %1618 = vmatpush.msra.mxu0 0.0
        %1619 = vmatpush.msra.mxu0 0.0
        %1620 = vmatpush.msra.mxu0 0.0
        %1621 = vmatpush.msra.mxu0 0.0
        %1622 = vmatpush.msra.mxu0 %v1562
        %1623 = vmatpush.msra.mxu0 %v1560
        %1624 = vmatpush.msra.mxu0 %v1558
        %1625 = vmatpush.msra.mxu0 %v1556
        %1626 = vmatpush.msra.mxu0 %v1554
        %1627 = vmatpush.msra.mxu0 %v1552
        %1628 = vmatpush.msra.mxu0 %v1550
        %1629 = vmatpush.msra.mxu0 %v1548
        %1630 = vmatpush.msra.mxu0 %v1546
        %1631 = vmatpush.msra.mxu0 %v1544
        %1632 = vmatpush.msra.mxu0 %v1542
        %1633 = vmatmul.f32.gmra.mxu0 %v1583
        %v1634 = vpop.f32.mrf.mxu0
        %v1635 = vadd.f32 %v1609, %v1634
        %1636 = vmatmul.f32.gmra.mxu0 %v1586
        %v1637 = vpop.f32.mrf.mxu0
        %v1638 = vadd.f32 %v1612, %v1637
        %1639 = vmatmul.f32.gmra.mxu0 %v1589
        %v1640 = vpop.f32.mrf.mxu0
        %v1641 = vadd.f32 %v1615, %v1640
        %1642 = vdwg.mxu0
        %1643 = vmatpush.msra.mxu0 %v1541
        %1644 = vmatpush.msra.mxu0 %v1539
        %1645 = vmatpush.msra.mxu0 %v1537
        %1646 = vmatpush.msra.mxu0 %v1535
        %1647 = vmatpush.msra.mxu0 %v1533
        %1648 = vmatpush.msra.mxu0 %v1531
        %1649 = vmatpush.msra.mxu0 %v1529
        %1650 = vmatpush.msra.mxu0 %v1527
        %1651 = vmatpush.msra.mxu0 %v1525
        %1652 = vmatpush.msra.mxu0 %v1523
        %1653 = vmatpush.msra.mxu0 %v1521
        %1654 = vmatpush.msra.mxu0 %v1519
        %1655 = vmatpush.msra.mxu0 %v1517
        %1656 = vmatpush.msra.mxu0 %v1515
        %1657 = vmatpush.msra.mxu0 %v1513
        %1658 = vmatpush.msra.mxu0 %v1511
        %1659 = vmatmul.f32.gmra.mxu0 %v1504
        %v1660 = vpop.f32.mrf.mxu0
        %v1661 = vadd.f32 %v1570, %v1660
        %1662 = vmatmul.f32.gmra.mxu0 %v1506
        %v1663 = vpop.f32.mrf.mxu0
        %v1664 = vadd.f32 %v1575, %v1663
        %1665 = vmatmul.f32.gmra.mxu0 %v1508
        %v1666 = vpop.f32.mrf.mxu0
        %v1667 = vadd.f32 %v1580, %v1666
        %1668 = vdwg.mxu0
        %1669 = vmatpush.msra.mxu0 0.0
        %1670 = vmatpush.msra.mxu0 0.0
        %1671 = vmatpush.msra.mxu0 0.0
        %1672 = vmatpush.msra.mxu0 0.0
        %1673 = vmatpush.msra.mxu0 0.0
        %1674 = vmatpush.msra.mxu0 %v1563
        %1675 = vmatpush.msra.mxu0 %v1561
        %1676 = vmatpush.msra.mxu0 %v1559
        %1677 = vmatpush.msra.mxu0 %v1557
        %1678 = vmatpush.msra.mxu0 %v1555
        %1679 = vmatpush.msra.mxu0 %v1553
        %1680 = vmatpush.msra.mxu0 %v1551
        %1681 = vmatpush.msra.mxu0 %v1549
        %1682 = vmatpush.msra.mxu0 %v1547
        %1683 = vmatpush.msra.mxu0 %v1545
        %1684 = vmatpush.msra.mxu0 %v1543
        %1685 = vmatmul.f32.gmra.mxu0 %v1583
        %v1686 = vpop.f32.mrf.mxu0
        %v1687 = vadd.f32 %v1661, %v1686
        %1688 = vmatmul.f32.gmra.mxu0 %v1586
        %v1689 = vpop.f32.mrf.mxu0
        %v1690 = vadd.f32 %v1664, %v1689
        %1691 = vmatmul.f32.gmra.mxu0 %v1589
        %v1692 = vpop.f32.mrf.mxu0
        %v1693 = vadd.f32 %v1667, %v1692
        %1694 = vdwg.mxu0
        %v1695 = vld [vmem:[#allocation3] sm:$0xff]
        %v1696 = vld [vmem:[#allocation3 + $0x8] sm:$0xff]
        %v1697 = vld [vmem:[#allocation3 + $0x10] sm:$0xff]
        %v1698 = vld [vmem:[#allocation3 + $0x18] sm:$0xff]
        %v1699 = vld [vmem:[#allocation3 + $0x20] sm:$0xff]
        %v1700 = vld [vmem:[#allocation3 + $0x28] sm:$0xff]
        %v1701 = vadd.f32 %v1695, %v1635
        %v1702 = vadd.f32 %v1696, %v1687
        %v1703 = vadd.f32 %v1697, %v1638
        %v1704 = vadd.f32 %v1698, %v1690
        %v1705 = vadd.f32 %v1699, %v1641
        %v1706 = vadd.f32 %v1700, %v1693
        %v1707 = vld [vmem:[%s7] sm:$0xff]
        %v1708 = vld [vmem:[%s7 + $0x8] sm:$0xff]
        %v1709 = vld [vmem:[%s7 + $0x10] sm:$0xff]
        %1711 = vset.pattern.permute.xlu0 0
        %1712 = vperm.xlu0 %1711, %v1707
        %v1713 = vpop.permute.xlu0 %1712
        %1716 = vset.pattern.permute.xlu0 0
        %1717 = vperm.xlu0 %1716, %v1708
        %v1718 = vpop.permute.xlu0 %1717
        %1721 = vset.pattern.permute.xlu0 0
        %1722 = vperm.xlu0 %1721, %v1709
        %v1723 = vpop.permute.xlu0 %1722
        %v1725 = vmul.f32 %v1701, %v1713
        %v1726 = vmul.f32 %v1702, %v1713
        %v1727 = vmul.f32 %v1703, %v1718
        %v1728 = vmul.f32 %v1704, %v1718
        %v1729 = vmul.f32 %v1705, %v1723
        %v1730 = vmul.f32 %v1706, %v1723
        %v1731 = vld [vmem:[%s8] sm:$0xff]
        %v1732 = vld [vmem:[%s8 + $0x8] sm:$0xff]
        %v1733 = vld [vmem:[%s8 + $0x10] sm:$0xff]
        %1735 = vset.pattern.permute.xlu0 0
        %1736 = vperm.xlu0 %1735, %v1731
        %v1737 = vpop.permute.xlu0 %1736
        %1740 = vset.pattern.permute.xlu0 0
        %1741 = vperm.xlu0 %1740, %v1732
        %v1742 = vpop.permute.xlu0 %1741
        %1745 = vset.pattern.permute.xlu0 0
        %1746 = vperm.xlu0 %1745, %v1733
        %v1747 = vpop.permute.xlu0 %1746
        %v1749 = vadd.f32 %v1725, %v1737
        %v1750 = vadd.f32 %v1726, %v1737
        %v1751 = vadd.f32 %v1727, %v1742
        %v1752 = vadd.f32 %v1728, %v1742
        %v1753 = vadd.f32 %v1729, %v1747
        %v1754 = vadd.f32 %v1730, %v1747
        %v1755 = vmax.f32 %v1749, 0.0
        %v1756 = vmax.f32 %v1750, 0.0
        %v1757 = vmax.f32 %v1751, 0.0
        %v1758 = vmax.f32 %v1752, 0.0
        %v1759 = vmax.f32 %v1753, 0.0
        %v1760 = vmax.f32 %v1754, 0.0
        %v1761 = vadd.f32 %v1755, %v1756
        %1762 = vadd.xlane.f32.xlu0 %v1761
        %v1763 = vpop.xlane.xlu0 %1762
        %v1764 = vadd.f32 %v1757, %v1758
        %1765 = vadd.xlane.f32.xlu0 %v1764
        %v1766 = vpop.xlane.xlu0 %1765
        %v1767 = vadd.f32 %v1759, %v1760
        %1768 = vadd.xlane.f32.xlu0 %v1767
        %v1769 = vpop.xlane.xlu0 %1768
        %v1770 = vmul.f32 %v1763, 0.00390625
        %v1771 = vmul.f32 %v1766, 0.00390625
        %v1772 = vmul.f32 %v1769, 0.00390625
        %v1773 = vld [vmem:[%s9] sm:$0xff]
        %v1774 = vld [vmem:[%s9 + $0x8] sm:$0xff]
        %v1775 = vld [vmem:[%s9 + $0x10] sm:$0xff]
        %v1776 = vld [vmem:[%s9 + $0x18] sm:$0xff]
        %v1777 = vld [vmem:[%s10] sm:$0xff]
        %v1778 = vld [vmem:[%s10 + $0x8] sm:$0xff]
        %v1779 = vld [vmem:[%s10 + $0x10] sm:$0xff]
        %v1780 = vld [vmem:[%s10 + $0x18] sm:$0xff]
        %vm1781 = vcmask 195584
        %v1783 = vsel %vm1781, %v1773, 0
        %v1786 = vsel %vm1781, %v1774, 0
        %v1789 = vsel %vm1781, %v1775, 0
        %v1792 = vsel %vm1781, %v1776, 0
        %1794 = vmatpush.msra.mxu0 0.0
        %1795 = vmatpush.msra.mxu0 0.0
        %1796 = vmatpush.msra.mxu0 0.0
        %1797 = vmatpush.msra.mxu0 0.0
        %1798 = vmatpush.msra.mxu0 0.0
        %1799 = vmatpush.msra.mxu0 0.0
        %1800 = vmatpush.msra.mxu0 0.0
        %1801 = vmatpush.msra.mxu0 0.0
        %1802 = vmatpush.msra.mxu0 0.0
        %1803 = vmatpush.msra.mxu0 0.0
        %1804 = vmatpush.msra.mxu0 0.0
        %1805 = vmatpush.msra.mxu0 0.0
        %1806 = vmatpush.msra.mxu0 0.0
        %1807 = vmatpush.msra.mxu0 %v1772
        %1808 = vmatpush.msra.mxu0 %v1771
        %1809 = vmatpush.msra.mxu0 %v1770
        %1810 = vmatmul.f32.gmra.mxu0 %v1783
        %v1811 = vpop.f32.mrf.mxu0
        %v1812 = vadd.f32 %v1777, %v1811
        %1813 = vmatmul.f32.gmra.mxu0 %v1786
        %v1814 = vpop.f32.mrf.mxu0
        %v1815 = vadd.f32 %v1778, %v1814
        %1816 = vmatmul.f32.gmra.mxu0 %v1789
        %v1817 = vpop.f32.mrf.mxu0
        %v1818 = vadd.f32 %v1779, %v1817
        %1819 = vmatmul.f32.gmra.mxu0 %v1792
        %v1820 = vpop.f32.mrf.mxu0
        %v1821 = vadd.f32 %v1780, %v1820
        %1822 = vdwg.mxu0
        %vm1823 = vcmask 7168
        %1824 = vst.msk [vmem:[%s430] sm:$0xff] %vm1823, %v1812
        %1825 = vst.msk [vmem:[%s430 + $0x8] sm:$0xff] %vm1823, %v1815
        %1826 = vst.msk [vmem:[%s430 + $0x10] sm:$0xff] %vm1823, %v1818
        %1827 = vst.msk [vmem:[%s430 + $0x18] sm:$0xff] %vm1823, %v1821
        %p1828 = scmp.lt.s32.totalorder %s24, 1
        %s1829 = scalar_select %p1828, %s24, 1
        %s1830 = smul.addr %s1829, 4
        %s1831 = smul.addr %s1830, 8
        %s1832 = scalar_lea.vmem %s12, %s1831
        // Predicated region
        $region73: #{tpu_custom_call.1} parent=67 // pred_check
          %p1833 = pneg %p299
        $region74: #{tpu_custom_call.1} parent=67 // pred_check_branch
          %1835 = sbr.rel (%p1833) target = $region76
        $region75: #{tpu_custom_call.1} parent=67 // pred_region
          _
        $region76: #{tpu_custom_call.1} parent=67 // pred_fallthru
          _
      $region68: #{tpu_custom_call.1} parent=5 // pred_fallthru
        _
      %p1836 = scmp.le.s32.totalorder 2, %s19
      // Predicated region
      $region77: #{tpu_custom_call.1} parent=5 // pred_check
        %p1837 = pneg %p1836
      $region78: #{tpu_custom_call.1} parent=5 // pred_check_branch
        %1839 = sbr.rel (%p1837) target = $region80
      $region79: #{tpu_custom_call.1} parent=5 // pred_region
        %s1840 = ssub.s32 %s19, 2
        // Predicated region
        $region81: #{tpu_custom_call.1} parent=79 // pred_check
          %p1841 = pneg %p305
        $region82: #{tpu_custom_call.1} parent=79 // pred_check_branch
          %1843 = sbr.rel (%p1841) target = $region84
        $region83: #{tpu_custom_call.1} parent=79 // pred_region
          %p1844 = scmp.lt.s32.totalorder %s25, 1
          %s1845 = scalar_select %p1844, %s25, 1
          %s1846 = smul.addr %s1845, 4
          %s1847 = smul.addr %s1846, 8
          %s1848 = scalar_lea.vmem %s12, %s1847
        $region84: #{tpu_custom_call.1} parent=79 // pred_fallthru
          _
      $region80: #{tpu_custom_call.1} parent=5 // pred_fallthru
        _
    $region6: #{tpu_custom_call.1} parent=1 // loop_footer
      %s23 = sadd.s32 1, %s19
    $region7: #{tpu_custom_call.1} parent=1 // loop_footer_branch
      %18 = sbr.rel target = $region3
    $region8: #{tpu_custom_call.1} parent=1 // loop_exit
      _
    %1849 = vsyncpa [#allocation5], 1
    %s1850 = scalar_lea.sflag [#allocation5], 1
    %1851 = vsyncpa %s1850, 1

</llo_original>
